<compile_context>
chip_gen: v6e
topology: v6e:2x2x1
jax: 0.10.0
libtpu: 0.0.40
codegen_flags: <defaults>
</compile_context>

<pallas_src>
import functools

import jax
import jax.numpy as jnp
from jax.experimental import pallas as pl
from jax.experimental.pallas import tpu as pltpu


def _sub_blocks(total, target):
    """Static (start, size) sub-blocks covering [0, total) with size <= target."""
    blocks = []
    s = 0
    while s < total:
        sz = min(target, total - s)
        blocks.append((s, sz))
        s += sz
    return blocks


def _widx(p, r, dx, ci, co, cin, cout):
    """Flat index into the collapsed weight vector laid out as [p, r, dx, ci, co]."""
    return (((p * 3 + r) * 3 + dx) * cin + ci) * cout + co


def _upsample_conv_kernel(x_ref, wc_ref, b_ref, o_ref, *, row_blk, lane_blk):
    """One (batch, H-tile) grid step: both row phases of a TH-row output slab.

    x_ref : (Cin, TH+2, 2W+2)   width-repeated, zero-bordered halo tile   (VMEM)
    wc_ref: (2*3*3*Cin*Cout,)   collapsed weights, flat [p, r, dx, ci, co] (SMEM)
    b_ref : (Cout,)             bias                                       (SMEM)
    o_ref : (Cout, TH, 4W)      lanes [0,2W) = even output rows, [2W,4W) = odd (VMEM)
    """
    cin, _, wp = x_ref.shape
    cout, th, _ = o_ref.shape
    w2 = wp - 2  # = 2 * W

    # Inner sub-tiling keeps the 2*Cout accumulators vreg-resident: every tap update
    # lands before the single store per accumulator (no VMEM round-trips).
    for (rs, rb) in _sub_blocks(th, row_blk):
        for (ls, lb) in _sub_blocks(w2, lane_blk):
            # 2 row phases x Cout accumulators, initialized with the bias.
            acc = [[jnp.full((rb, lb), b_ref[co], dtype=jnp.float32)
                    for co in range(cout)] for _ in range(2)]
            for ci in range(cin):
                for r in range(3):          # padded row offset, shared by both phases
                    for dx in range(3):     # column tap on the width-repeated input
                        tap = x_ref[ci, rs + r:rs + r + rb,
                                    ls + dx:ls + dx + lb].astype(jnp.float32)
                        if r <= 1:          # phase 0 (even output rows) uses rows {0,1}
                            for co in range(cout):
                                w = wc_ref[_widx(0, r, dx, ci, co, cin, cout)]
                                acc[0][co] = acc[0][co] + w * tap
                        if r >= 1:          # phase 1 (odd output rows) uses rows {1,2}
                            for co in range(cout):
                                w = wc_ref[_widx(1, r, dx, ci, co, cin, cout)]
                                acc[1][co] = acc[1][co] + w * tap
            for p in range(2):
                for co in range(cout):
                    o_ref[co, rs:rs + rb,
                          p * w2 + ls:p * w2 + ls + lb] = acc[p][co].astype(o_ref.dtype)


@functools.partial(jax.jit, static_argnames=("kernel_size", "tile_h"))
def upsample_forward(x_nchw, weight_oihw, bias, kernel_size=3, tile_h=32):
    """Equivalent of Upsample.forward: nearest 2x upsample + Conv2d(3x3, stride 1, 'same').

    x_nchw:      (N, C, H, W)   NCHW (PyTorch layout)
    weight_oihw: (C, C, 3, 3)   PyTorch Conv2d weight layout (OIHW)
    bias:        (C,)
    returns:     (N, C, 2H, 2W) NCHW
    """
    if kernel_size != 3:
        raise NotImplementedError("sub-pixel decomposition implemented for kernel_size=3")
    n, cin, h, w = x_nchw.shape
    cout = weight_oihw.shape[0]
    w2 = 2 * w

    # ---- H tiling (1-row halo) ----
    th = min(int(tile_h), h)
    n_t = -(-h // th)                 # ceil(h / th)
    hp = n_t * th                     # padded H so all tiles are uniform

    # ---- prologue (one fused XLA pass): width nearest-repeat + zero border +
    #      overlapping halo tiles.  Height upsample is folded into the kernel. ----
    xr = jnp.repeat(x_nchw, 2, axis=3)                              # (N, C, H, 2W)
    xrp = jnp.pad(xr, ((0, 0), (0, 0), (1, 1 + hp - h), (1, 1)))    # (N, C, Hp+2, 2W+2)
    row_idx = jnp.arange(n_t)[:, None] * th + jnp.arange(th + 2)[None, :]
    x_tiles = xrp[:, :, row_idx, :]                                 # (N, C, nT, TH+2, 2W+2)

    # ---- collapsed per-row-phase weights, flat [p, r, dx, ci, co] for SMEM ----
    wf = weight_oihw.astype(jnp.float32)                            # (Co, Ci, Kh, Kw)
    zero = jnp.zeros_like(wf[:, :, 0, :])
    # phase 0: output row 2i   reads padded rows {i, i+1}   with (k0, k1+k2)
    w_ph0 = jnp.stack([wf[:, :, 0, :], wf[:, :, 1, :] + wf[:, :, 2, :], zero], axis=0)
    # phase 1: output row 2i+1 reads padded rows {i+1, i+2} with (k0+k1, k2)
    w_ph1 = jnp.stack([zero, wf[:, :, 0, :] + wf[:, :, 1, :], wf[:, :, 2, :]], axis=0)
    wrow = jnp.stack([w_ph0, w_ph1], axis=0)                        # (2, 3, Co, Ci, Kw)
    wc_flat = jnp.transpose(wrow, (0, 1, 4, 3, 2)).reshape(-1)      # [p, r, dx, ci, co]

    # ---- inner sub-tile sizes: 2*Cout accs of (row_blk, lane_blk) stay in vregs ----
    row_blk = 8
    lane_blk = 256

    kernel = functools.partial(_upsample_conv_kernel, row_blk=row_blk, lane_blk=lane_blk)

    # ---- VMEM limit from actual block sizes (double-buffered), capped for v7x ----
    bytes_el = x_nchw.dtype.itemsize
    in_blk_bytes = cin * (th + 2) * (w2 + 2) * bytes_el
    out_blk_bytes = cout * th * 2 * w2 * bytes_el
    vmem_limit = int(min(64 * 1024 * 1024,
                         max(32 * 1024 * 1024,
                             4 * (in_blk_bytes + out_blk_bytes) + (2 << 20))))

    cost = pl.CostEstimate(
        flops=2 * (cin * 2 * 3) * n * cout * (2 * hp) * w2,
        transcendentals=0,
        bytes_accessed=int(x_tiles.size * bytes_el + wc_flat.size * 4 + bias.size * 4
                           + n * cout * (2 * hp) * w2 * bytes_el),
    )

    out_4w = pl.pallas_call(
        kernel,
        out_shape=jax.ShapeDtypeStruct((n, cout, n_t, th, 2 * w2), x_nchw.dtype),
        grid_spec=pltpu.PrefetchScalarGridSpec(
            num_scalar_prefetch=0,
            grid=(n, n_t),                                           # (batch, H tile)
            in_specs=[
                pl.BlockSpec((None, cin, None, th + 2, w2 + 2),
                             lambda b, t: (b, 0, t, 0, 0)),
                pl.BlockSpec(memory_space=pltpu.MemorySpace.SMEM),   # collapsed weights
                pl.BlockSpec(memory_space=pltpu.MemorySpace.SMEM),   # bias
            ],
            out_specs=pl.BlockSpec((None, cout, None, th, 2 * w2),
                                   lambda b, t: (b, 0, t, 0, 0)),
        ),
        compiler_params=pltpu.CompilerParams(
            dimension_semantics=("parallel", "parallel"),
            vmem_limit_bytes=vmem_limit,
        ),
        cost_estimate=cost,
    )(x_tiles, wc_flat, bias.astype(jnp.float32))

    # Free (row-major) reshape: (N, C, nT, TH, 2, 2W) -> (N, C, 2*Hp, 2W) == NCHW.
    out = out_4w.reshape(n, cout, 2 * hp, w2)
    if hp != h:
        out = out[:, :, : 2 * h, :]
    return out


if __name__ == "__main__":
    # Small, deterministic setup consistent with Upsample(in_channels=4).
    N, C, H, W = 2, 4, 16, 16
    K = 3

    key = jax.random.PRNGKey(0)
    k_x, k_w, k_b = jax.random.split(key, 3)
    x = jax.random.normal(k_x, (N, C, H, W), dtype=jnp.float32)
    weight = 0.1 * jax.random.normal(k_w, (C, C, K, K), dtype=jnp.float32)
    bias = 0.1 * jax.random.normal(k_b, (C,), dtype=jnp.float32)

    # Reference: plain-JAX nearest 2x + 'same' conv (PyTorch semantics), f32-exact.
    x_up = jnp.repeat(jnp.repeat(x, 2, axis=2), 2, axis=3)
    ref = jax.lax.conv_general_dilated(
        x_up, weight, window_strides=(1, 1), padding="SAME",
        dimension_numbers=("NCHW", "OIHW", "NCHW"),
        precision=jax.lax.Precision.HIGHEST,
    ) + bias.reshape(1, C, 1, 1)

    # Exercise the H-tiled (halo) path: tile_h=8 -> 2 H-tiles per image at H=16.
    out_tiled = jax.block_until_ready(upsample_forward(x, weight, bias, tile_h=8))
    assert out_tiled.shape == (N, C, 2 * H, 2 * W), out_tiled.shape
    err_tiled = float(jnp.max(jnp.abs(out_tiled - ref)))
    assert err_tiled < 1e-4, err_tiled

    # Also check the default (single-tile) path.
    out_full = jax.block_until_ready(upsample_forward(x, weight, bias))
    err_full = float(jnp.max(jnp.abs(out_full - ref)))
    assert err_full < 1e-4, err_full

    print("KERNEL_OK")
</pallas_src>

<mosaic_0001>
module attributes {stable_mosaic.version = 11 : i64} {
  func.func @_upsample_conv_kernel(%arg0: i32, %arg1: i32, %arg2: memref<1x4x1x10x34xf32, #tpu.memory_space<vmem>>, %arg3: memref<288xf32, #tpu.memory_space<smem>>, %arg4: memref<4xf32, #tpu.memory_space<smem>>, %arg5: memref<1x4x1x8x64xf32, #tpu.memory_space<vmem>>) attributes {dimension_semantics = [#tpu.dimension_semantics<parallel>, #tpu.dimension_semantics<parallel>], iteration_bounds = array<i64: 2, 2>, scalar_prefetch = 0 : i64, scratch_operands = 0 : i64, tpu.core_type = #tpu.core_type<tc>, window_params = [{transform_indices = @transform_0, window_bounds = array<i64: 1, 4, 1, 10, 34>}, {transform_indices = @transform_1, window_bounds = array<i64: 288>}, {transform_indices = @transform_2, window_bounds = array<i64: 4>}, {transform_indices = @transform_3, window_bounds = array<i64: 1, 4, 1, 8, 64>}]} {
    %c0 = arith.constant 0 : index
    %0 = memref.load %arg4[%c0] : memref<4xf32, #tpu.memory_space<smem>>
    %1 = vector.broadcast %0 : f32 to vector<8x32xf32>
    %c1 = arith.constant 1 : index
    %2 = memref.load %arg4[%c1] : memref<4xf32, #tpu.memory_space<smem>>
    %3 = vector.broadcast %2 : f32 to vector<8x32xf32>
    %c2 = arith.constant 2 : index
    %4 = memref.load %arg4[%c2] : memref<4xf32, #tpu.memory_space<smem>>
    %5 = vector.broadcast %4 : f32 to vector<8x32xf32>
    %c3 = arith.constant 3 : index
    %6 = memref.load %arg4[%c3] : memref<4xf32, #tpu.memory_space<smem>>
    %7 = vector.broadcast %6 : f32 to vector<8x32xf32>
    %c0_0 = arith.constant 0 : index
    %8 = memref.load %arg4[%c0_0] : memref<4xf32, #tpu.memory_space<smem>>
    %9 = vector.broadcast %8 : f32 to vector<8x32xf32>
    %c1_1 = arith.constant 1 : index
    %10 = memref.load %arg4[%c1_1] : memref<4xf32, #tpu.memory_space<smem>>
    %11 = vector.broadcast %10 : f32 to vector<8x32xf32>
    %c2_2 = arith.constant 2 : index
    %12 = memref.load %arg4[%c2_2] : memref<4xf32, #tpu.memory_space<smem>>
    %13 = vector.broadcast %12 : f32 to vector<8x32xf32>
    %c3_3 = arith.constant 3 : index
    %14 = memref.load %arg4[%c3_3] : memref<4xf32, #tpu.memory_space<smem>>
    %15 = vector.broadcast %14 : f32 to vector<8x32xf32>
    %c0_4 = arith.constant 0 : index
    %c0_5 = arith.constant 0 : index
    %c0_6 = arith.constant 0 : index
    %c0_7 = arith.constant 0 : index
    %c0_8 = arith.constant 0 : index
    %16 = vector.load %arg2[%c0_4, %c0_5, %c0_6, %c0_7, %c0_8] : memref<1x4x1x10x34xf32, #tpu.memory_space<vmem>>, vector<1x1x1x8x32xf32>
    %17 = vector.shape_cast %16 : vector<1x1x1x8x32xf32> to vector<8x32xf32>
    %c0_9 = arith.constant 0 : index
    %18 = memref.load %arg3[%c0_9] : memref<288xf32, #tpu.memory_space<smem>>
    %19 = vector.broadcast %18 : f32 to vector<8x32xf32>
    %20 = arith.mulf %19, %17 : vector<8x32xf32>
    %21 = arith.addf %1, %20 : vector<8x32xf32>
    %c1_10 = arith.constant 1 : index
    %22 = memref.load %arg3[%c1_10] : memref<288xf32, #tpu.memory_space<smem>>
    %23 = vector.broadcast %22 : f32 to vector<8x32xf32>
    %24 = arith.mulf %23, %17 : vector<8x32xf32>
    %25 = arith.addf %3, %24 : vector<8x32xf32>
    %c2_11 = arith.constant 2 : index
    %26 = memref.load %arg3[%c2_11] : memref<288xf32, #tpu.memory_space<smem>>
    %27 = vector.broadcast %26 : f32 to vector<8x32xf32>
    %28 = arith.mulf %27, %17 : vector<8x32xf32>
    %29 = arith.addf %5, %28 : vector<8x32xf32>
    %c3_12 = arith.constant 3 : index
    %30 = memref.load %arg3[%c3_12] : memref<288xf32, #tpu.memory_space<smem>>
    %31 = vector.broadcast %30 : f32 to vector<8x32xf32>
    %32 = arith.mulf %31, %17 : vector<8x32xf32>
    %33 = arith.addf %7, %32 : vector<8x32xf32>
    %c0_13 = arith.constant 0 : index
    %c0_14 = arith.constant 0 : index
    %c0_15 = arith.constant 0 : index
    %c0_16 = arith.constant 0 : index
    %c1_17 = arith.constant 1 : index
    %34 = vector.load %arg2[%c0_13, %c0_14, %c0_15, %c0_16, %c1_17] : memref<1x4x1x10x34xf32, #tpu.memory_space<vmem>>, vector<1x1x1x8x32xf32>
    %35 = vector.shape_cast %34 : vector<1x1x1x8x32xf32> to vector<8x32xf32>
    %c16 = arith.constant 16 : index
    %36 = memref.load %arg3[%c16] : memref<288xf32, #tpu.memory_space<smem>>
    %37 = vector.broadcast %36 : f32 to vector<8x32xf32>
    %38 = arith.mulf %37, %35 : vector<8x32xf32>
    %39 = arith.addf %21, %38 : vector<8x32xf32>
    %c17 = arith.constant 17 : index
    %40 = memref.load %arg3[%c17] : memref<288xf32, #tpu.memory_space<smem>>
    %41 = vector.broadcast %40 : f32 to vector<8x32xf32>
    %42 = arith.mulf %41, %35 : vector<8x32xf32>
    %43 = arith.addf %25, %42 : vector<8x32xf32>
    %c18 = arith.constant 18 : index
    %44 = memref.load %arg3[%c18] : memref<288xf32, #tpu.memory_space<smem>>
    %45 = vector.broadcast %44 : f32 to vector<8x32xf32>
    %46 = arith.mulf %45, %35 : vector<8x32xf32>
    %47 = arith.addf %29, %46 : vector<8x32xf32>
    %c19 = arith.constant 19 : index
    %48 = memref.load %arg3[%c19] : memref<288xf32, #tpu.memory_space<smem>>
    %49 = vector.broadcast %48 : f32 to vector<8x32xf32>
    %50 = arith.mulf %49, %35 : vector<8x32xf32>
    %51 = arith.addf %33, %50 : vector<8x32xf32>
    %c0_18 = arith.constant 0 : index
    %c0_19 = arith.constant 0 : index
    %c0_20 = arith.constant 0 : index
    %c0_21 = arith.constant 0 : index
    %c2_22 = arith.constant 2 : index
    %52 = vector.load %arg2[%c0_18, %c0_19, %c0_20, %c0_21, %c2_22] : memref<1x4x1x10x34xf32, #tpu.memory_space<vmem>>, vector<1x1x1x8x32xf32>
    %53 = vector.shape_cast %52 : vector<1x1x1x8x32xf32> to vector<8x32xf32>
    %c32 = arith.constant 32 : index
    %54 = memref.load %arg3[%c32] : memref<288xf32, #tpu.memory_space<smem>>
    %55 = vector.broadcast %54 : f32 to vector<8x32xf32>
    %56 = arith.mulf %55, %53 : vector<8x32xf32>
    %57 = arith.addf %39, %56 : vector<8x32xf32>
    %c33 = arith.constant 33 : index
    %58 = memref.load %arg3[%c33] : memref<288xf32, #tpu.memory_space<smem>>
    %59 = vector.broadcast %58 : f32 to vector<8x32xf32>
    %60 = arith.mulf %59, %53 : vector<8x32xf32>
    %61 = arith.addf %43, %60 : vector<8x32xf32>
    %c34 = arith.constant 34 : index
    %62 = memref.load %arg3[%c34] : memref<288xf32, #tpu.memory_space<smem>>
    %63 = vector.broadcast %62 : f32 to vector<8x32xf32>
    %64 = arith.mulf %63, %53 : vector<8x32xf32>
    %65 = arith.addf %47, %64 : vector<8x32xf32>
    %c35 = arith.constant 35 : index
    %66 = memref.load %arg3[%c35] : memref<288xf32, #tpu.memory_space<smem>>
    %67 = vector.broadcast %66 : f32 to vector<8x32xf32>
    %68 = arith.mulf %67, %53 : vector<8x32xf32>
    %69 = arith.addf %51, %68 : vector<8x32xf32>
    %c0_23 = arith.constant 0 : index
    %c0_24 = arith.constant 0 : index
    %c0_25 = arith.constant 0 : index
    %c1_26 = arith.constant 1 : index
    %c0_27 = arith.constant 0 : index
    %70 = vector.load %arg2[%c0_23, %c0_24, %c0_25, %c1_26, %c0_27] : memref<1x4x1x10x34xf32, #tpu.memory_space<vmem>>, vector<1x1x1x8x32xf32>
    %71 = vector.shape_cast %70 : vector<1x1x1x8x32xf32> to vector<8x32xf32>
    %c48 = arith.constant 48 : index
    %72 = memref.load %arg3[%c48] : memref<288xf32, #tpu.memory_space<smem>>
    %73 = vector.broadcast %72 : f32 to vector<8x32xf32>
    %74 = arith.mulf %73, %71 : vector<8x32xf32>
    %75 = arith.addf %57, %74 : vector<8x32xf32>
    %c49 = arith.constant 49 : index
    %76 = memref.load %arg3[%c49] : memref<288xf32, #tpu.memory_space<smem>>
    %77 = vector.broadcast %76 : f32 to vector<8x32xf32>
    %78 = arith.mulf %77, %71 : vector<8x32xf32>
    %79 = arith.addf %61, %78 : vector<8x32xf32>
    %c50 = arith.constant 50 : index
    %80 = memref.load %arg3[%c50] : memref<288xf32, #tpu.memory_space<smem>>
    %81 = vector.broadcast %80 : f32 to vector<8x32xf32>
    %82 = arith.mulf %81, %71 : vector<8x32xf32>
    %83 = arith.addf %65, %82 : vector<8x32xf32>
    %c51 = arith.constant 51 : index
    %84 = memref.load %arg3[%c51] : memref<288xf32, #tpu.memory_space<smem>>
    %85 = vector.broadcast %84 : f32 to vector<8x32xf32>
    %86 = arith.mulf %85, %71 : vector<8x32xf32>
    %87 = arith.addf %69, %86 : vector<8x32xf32>
    %c192 = arith.constant 192 : index
    %88 = memref.load %arg3[%c192] : memref<288xf32, #tpu.memory_space<smem>>
    %89 = vector.broadcast %88 : f32 to vector<8x32xf32>
    %90 = arith.mulf %89, %71 : vector<8x32xf32>
    %91 = arith.addf %9, %90 : vector<8x32xf32>
    %c193 = arith.constant 193 : index
    %92 = memref.load %arg3[%c193] : memref<288xf32, #tpu.memory_space<smem>>
    %93 = vector.broadcast %92 : f32 to vector<8x32xf32>
    %94 = arith.mulf %93, %71 : vector<8x32xf32>
    %95 = arith.addf %11, %94 : vector<8x32xf32>
    %c194 = arith.constant 194 : index
    %96 = memref.load %arg3[%c194] : memref<288xf32, #tpu.memory_space<smem>>
    %97 = vector.broadcast %96 : f32 to vector<8x32xf32>
    %98 = arith.mulf %97, %71 : vector<8x32xf32>
    %99 = arith.addf %13, %98 : vector<8x32xf32>
    %c195 = arith.constant 195 : index
    %100 = memref.load %arg3[%c195] : memref<288xf32, #tpu.memory_space<smem>>
    %101 = vector.broadcast %100 : f32 to vector<8x32xf32>
    %102 = arith.mulf %101, %71 : vector<8x32xf32>
    %103 = arith.addf %15, %102 : vector<8x32xf32>
    %c0_28 = arith.constant 0 : index
    %c0_29 = arith.constant 0 : index
    %c0_30 = arith.constant 0 : index
    %c1_31 = arith.constant 1 : index
    %c1_32 = arith.constant 1 : index
    %104 = vector.load %arg2[%c0_28, %c0_29, %c0_30, %c1_31, %c1_32] : memref<1x4x1x10x34xf32, #tpu.memory_space<vmem>>, vector<1x1x1x8x32xf32>
    %105 = vector.shape_cast %104 : vector<1x1x1x8x32xf32> to vector<8x32xf32>
    %c64 = arith.constant 64 : index
    %106 = memref.load %arg3[%c64] : memref<288xf32, #tpu.memory_space<smem>>
    %107 = vector.broadcast %106 : f32 to vector<8x32xf32>
    %108 = arith.mulf %107, %105 : vector<8x32xf32>
    %109 = arith.addf %75, %108 : vector<8x32xf32>
    %c65 = arith.constant 65 : index
    %110 = memref.load %arg3[%c65] : memref<288xf32, #tpu.memory_space<smem>>
    %111 = vector.broadcast %110 : f32 to vector<8x32xf32>
    %112 = arith.mulf %111, %105 : vector<8x32xf32>
    %113 = arith.addf %79, %112 : vector<8x32xf32>
    %c66 = arith.constant 66 : index
    %114 = memref.load %arg3[%c66] : memref<288xf32, #tpu.memory_space<smem>>
    %115 = vector.broadcast %114 : f32 to vector<8x32xf32>
    %116 = arith.mulf %115, %105 : vector<8x32xf32>
    %117 = arith.addf %83, %116 : vector<8x32xf32>
    %c67 = arith.constant 67 : index
    %118 = memref.load %arg3[%c67] : memref<288xf32, #tpu.memory_space<smem>>
    %119 = vector.broadcast %118 : f32 to vector<8x32xf32>
    %120 = arith.mulf %119, %105 : vector<8x32xf32>
    %121 = arith.addf %87, %120 : vector<8x32xf32>
    %c208 = arith.constant 208 : index
    %122 = memref.load %arg3[%c208] : memref<288xf32, #tpu.memory_space<smem>>
    %123 = vector.broadcast %122 : f32 to vector<8x32xf32>
    %124 = arith.mulf %123, %105 : vector<8x32xf32>
    %125 = arith.addf %91, %124 : vector<8x32xf32>
    %c209 = arith.constant 209 : index
    %126 = memref.load %arg3[%c209] : memref<288xf32, #tpu.memory_space<smem>>
    %127 = vector.broadcast %126 : f32 to vector<8x32xf32>
    %128 = arith.mulf %127, %105 : vector<8x32xf32>
    %129 = arith.addf %95, %128 : vector<8x32xf32>
    %c210 = arith.constant 210 : index
    %130 = memref.load %arg3[%c210] : memref<288xf32, #tpu.memory_space<smem>>
    %131 = vector.broadcast %130 : f32 to vector<8x32xf32>
    %132 = arith.mulf %131, %105 : vector<8x32xf32>
    %133 = arith.addf %99, %132 : vector<8x32xf32>
    %c211 = arith.constant 211 : index
    %134 = memref.load %arg3[%c211] : memref<288xf32, #tpu.memory_space<smem>>
    %135 = vector.broadcast %134 : f32 to vector<8x32xf32>
    %136 = arith.mulf %135, %105 : vector<8x32xf32>
    %137 = arith.addf %103, %136 : vector<8x32xf32>
    %c0_33 = arith.constant 0 : index
    %c0_34 = arith.constant 0 : index
    %c0_35 = arith.constant 0 : index
    %c1_36 = arith.constant 1 : index
    %c2_37 = arith.constant 2 : index
    %138 = vector.load %arg2[%c0_33, %c0_34, %c0_35, %c1_36, %c2_37] : memref<1x4x1x10x34xf32, #tpu.memory_space<vmem>>, vector<1x1x1x8x32xf32>
    %139 = vector.shape_cast %138 : vector<1x1x1x8x32xf32> to vector<8x32xf32>
    %c80 = arith.constant 80 : index
    %140 = memref.load %arg3[%c80] : memref<288xf32, #tpu.memory_space<smem>>
    %141 = vector.broadcast %140 : f32 to vector<8x32xf32>
    %142 = arith.mulf %141, %139 : vector<8x32xf32>
    %143 = arith.addf %109, %142 : vector<8x32xf32>
    %c81 = arith.constant 81 : index
    %144 = memref.load %arg3[%c81] : memref<288xf32, #tpu.memory_space<smem>>
    %145 = vector.broadcast %144 : f32 to vector<8x32xf32>
    %146 = arith.mulf %145, %139 : vector<8x32xf32>
    %147 = arith.addf %113, %146 : vector<8x32xf32>
    %c82 = arith.constant 82 : index
    %148 = memref.load %arg3[%c82] : memref<288xf32, #tpu.memory_space<smem>>
    %149 = vector.broadcast %148 : f32 to vector<8x32xf32>
    %150 = arith.mulf %149, %139 : vector<8x32xf32>
    %151 = arith.addf %117, %150 : vector<8x32xf32>
    %c83 = arith.constant 83 : index
    %152 = memref.load %arg3[%c83] : memref<288xf32, #tpu.memory_space<smem>>
    %153 = vector.broadcast %152 : f32 to vector<8x32xf32>
    %154 = arith.mulf %153, %139 : vector<8x32xf32>
    %155 = arith.addf %121, %154 : vector<8x32xf32>
    %c224 = arith.constant 224 : index
    %156 = memref.load %arg3[%c224] : memref<288xf32, #tpu.memory_space<smem>>
    %157 = vector.broadcast %156 : f32 to vector<8x32xf32>
    %158 = arith.mulf %157, %139 : vector<8x32xf32>
    %159 = arith.addf %125, %158 : vector<8x32xf32>
    %c225 = arith.constant 225 : index
    %160 = memref.load %arg3[%c225] : memref<288xf32, #tpu.memory_space<smem>>
    %161 = vector.broadcast %160 : f32 to vector<8x32xf32>
    %162 = arith.mulf %161, %139 : vector<8x32xf32>
    %163 = arith.addf %129, %162 : vector<8x32xf32>
    %c226 = arith.constant 226 : index
    %164 = memref.load %arg3[%c226] : memref<288xf32, #tpu.memory_space<smem>>
    %165 = vector.broadcast %164 : f32 to vector<8x32xf32>
    %166 = arith.mulf %165, %139 : vector<8x32xf32>
    %167 = arith.addf %133, %166 : vector<8x32xf32>
    %c227 = arith.constant 227 : index
    %168 = memref.load %arg3[%c227] : memref<288xf32, #tpu.memory_space<smem>>
    %169 = vector.broadcast %168 : f32 to vector<8x32xf32>
    %170 = arith.mulf %169, %139 : vector<8x32xf32>
    %171 = arith.addf %137, %170 : vector<8x32xf32>
    %c0_38 = arith.constant 0 : index
    %c0_39 = arith.constant 0 : index
    %c0_40 = arith.constant 0 : index
    %c2_41 = arith.constant 2 : index
    %c0_42 = arith.constant 0 : index
    %172 = vector.load %arg2[%c0_38, %c0_39, %c0_40, %c2_41, %c0_42] : memref<1x4x1x10x34xf32, #tpu.memory_space<vmem>>, vector<1x1x1x8x32xf32>
    %173 = vector.shape_cast %172 : vector<1x1x1x8x32xf32> to vector<8x32xf32>
    %c240 = arith.constant 240 : index
    %174 = memref.load %arg3[%c240] : memref<288xf32, #tpu.memory_space<smem>>
    %175 = vector.broadcast %174 : f32 to vector<8x32xf32>
    %176 = arith.mulf %175, %173 : vector<8x32xf32>
    %177 = arith.addf %159, %176 : vector<8x32xf32>
    %c241 = arith.constant 241 : index
    %178 = memref.load %arg3[%c241] : memref<288xf32, #tpu.memory_space<smem>>
    %179 = vector.broadcast %178 : f32 to vector<8x32xf32>
    %180 = arith.mulf %179, %173 : vector<8x32xf32>
    %181 = arith.addf %163, %180 : vector<8x32xf32>
    %c242 = arith.constant 242 : index
    %182 = memref.load %arg3[%c242] : memref<288xf32, #tpu.memory_space<smem>>
    %183 = vector.broadcast %182 : f32 to vector<8x32xf32>
    %184 = arith.mulf %183, %173 : vector<8x32xf32>
    %185 = arith.addf %167, %184 : vector<8x32xf32>
    %c243 = arith.constant 243 : index
    %186 = memref.load %arg3[%c243] : memref<288xf32, #tpu.memory_space<smem>>
    %187 = vector.broadcast %186 : f32 to vector<8x32xf32>
    %188 = arith.mulf %187, %173 : vector<8x32xf32>
    %189 = arith.addf %171, %188 : vector<8x32xf32>
    %c0_43 = arith.constant 0 : index
    %c0_44 = arith.constant 0 : index
    %c0_45 = arith.constant 0 : index
    %c2_46 = arith.constant 2 : index
    %c1_47 = arith.constant 1 : index
    %190 = vector.load %arg2[%c0_43, %c0_44, %c0_45, %c2_46, %c1_47] : memref<1x4x1x10x34xf32, #tpu.memory_space<vmem>>, vector<1x1x1x8x32xf32>
    %191 = vector.shape_cast %190 : vector<1x1x1x8x32xf32> to vector<8x32xf32>
    %c256 = arith.constant 256 : index
    %192 = memref.load %arg3[%c256] : memref<288xf32, #tpu.memory_space<smem>>
    %193 = vector.broadcast %192 : f32 to vector<8x32xf32>
    %194 = arith.mulf %193, %191 : vector<8x32xf32>
    %195 = arith.addf %177, %194 : vector<8x32xf32>
    %c257 = arith.constant 257 : index
    %196 = memref.load %arg3[%c257] : memref<288xf32, #tpu.memory_space<smem>>
    %197 = vector.broadcast %196 : f32 to vector<8x32xf32>
    %198 = arith.mulf %197, %191 : vector<8x32xf32>
    %199 = arith.addf %181, %198 : vector<8x32xf32>
    %c258 = arith.constant 258 : index
    %200 = memref.load %arg3[%c258] : memref<288xf32, #tpu.memory_space<smem>>
    %201 = vector.broadcast %200 : f32 to vector<8x32xf32>
    %202 = arith.mulf %201, %191 : vector<8x32xf32>
    %203 = arith.addf %185, %202 : vector<8x32xf32>
    %c259 = arith.constant 259 : index
    %204 = memref.load %arg3[%c259] : memref<288xf32, #tpu.memory_space<smem>>
    %205 = vector.broadcast %204 : f32 to vector<8x32xf32>
    %206 = arith.mulf %205, %191 : vector<8x32xf32>
    %207 = arith.addf %189, %206 : vector<8x32xf32>
    %c0_48 = arith.constant 0 : index
    %c0_49 = arith.constant 0 : index
    %c0_50 = arith.constant 0 : index
    %c2_51 = arith.constant 2 : index
    %c2_52 = arith.constant 2 : index
    %208 = vector.load %arg2[%c0_48, %c0_49, %c0_50, %c2_51, %c2_52] : memref<1x4x1x10x34xf32, #tpu.memory_space<vmem>>, vector<1x1x1x8x32xf32>
    %209 = vector.shape_cast %208 : vector<1x1x1x8x32xf32> to vector<8x32xf32>
    %c272 = arith.constant 272 : index
    %210 = memref.load %arg3[%c272] : memref<288xf32, #tpu.memory_space<smem>>
    %211 = vector.broadcast %210 : f32 to vector<8x32xf32>
    %212 = arith.mulf %211, %209 : vector<8x32xf32>
    %213 = arith.addf %195, %212 : vector<8x32xf32>
    %c273 = arith.constant 273 : index
    %214 = memref.load %arg3[%c273] : memref<288xf32, #tpu.memory_space<smem>>
    %215 = vector.broadcast %214 : f32 to vector<8x32xf32>
    %216 = arith.mulf %215, %209 : vector<8x32xf32>
    %217 = arith.addf %199, %216 : vector<8x32xf32>
    %c274 = arith.constant 274 : index
    %218 = memref.load %arg3[%c274] : memref<288xf32, #tpu.memory_space<smem>>
    %219 = vector.broadcast %218 : f32 to vector<8x32xf32>
    %220 = arith.mulf %219, %209 : vector<8x32xf32>
    %221 = arith.addf %203, %220 : vector<8x32xf32>
    %c275 = arith.constant 275 : index
    %222 = memref.load %arg3[%c275] : memref<288xf32, #tpu.memory_space<smem>>
    %223 = vector.broadcast %222 : f32 to vector<8x32xf32>
    %224 = arith.mulf %223, %209 : vector<8x32xf32>
    %225 = arith.addf %207, %224 : vector<8x32xf32>
    %c0_53 = arith.constant 0 : index
    %c1_54 = arith.constant 1 : index
    %c0_55 = arith.constant 0 : index
    %c0_56 = arith.constant 0 : index
    %c0_57 = arith.constant 0 : index
    %226 = vector.load %arg2[%c0_53, %c1_54, %c0_55, %c0_56, %c0_57] : memref<1x4x1x10x34xf32, #tpu.memory_space<vmem>>, vector<1x1x1x8x32xf32>
    %227 = vector.shape_cast %226 : vector<1x1x1x8x32xf32> to vector<8x32xf32>
    %c4 = arith.constant 4 : index
    %228 = memref.load %arg3[%c4] : memref<288xf32, #tpu.memory_space<smem>>
    %229 = vector.broadcast %228 : f32 to vector<8x32xf32>
    %230 = arith.mulf %229, %227 : vector<8x32xf32>
    %231 = arith.addf %143, %230 : vector<8x32xf32>
    %c5 = arith.constant 5 : index
    %232 = memref.load %arg3[%c5] : memref<288xf32, #tpu.memory_space<smem>>
    %233 = vector.broadcast %232 : f32 to vector<8x32xf32>
    %234 = arith.mulf %233, %227 : vector<8x32xf32>
    %235 = arith.addf %147, %234 : vector<8x32xf32>
    %c6 = arith.constant 6 : index
    %236 = memref.load %arg3[%c6] : memref<288xf32, #tpu.memory_space<smem>>
    %237 = vector.broadcast %236 : f32 to vector<8x32xf32>
    %238 = arith.mulf %237, %227 : vector<8x32xf32>
    %239 = arith.addf %151, %238 : vector<8x32xf32>
    %c7 = arith.constant 7 : index
    %240 = memref.load %arg3[%c7] : memref<288xf32, #tpu.memory_space<smem>>
    %241 = vector.broadcast %240 : f32 to vector<8x32xf32>
    %242 = arith.mulf %241, %227 : vector<8x32xf32>
    %243 = arith.addf %155, %242 : vector<8x32xf32>
    %c0_58 = arith.constant 0 : index
    %c1_59 = arith.constant 1 : index
    %c0_60 = arith.constant 0 : index
    %c0_61 = arith.constant 0 : index
    %c1_62 = arith.constant 1 : index
    %244 = vector.load %arg2[%c0_58, %c1_59, %c0_60, %c0_61, %c1_62] : memref<1x4x1x10x34xf32, #tpu.memory_space<vmem>>, vector<1x1x1x8x32xf32>
    %245 = vector.shape_cast %244 : vector<1x1x1x8x32xf32> to vector<8x32xf32>
    %c20 = arith.constant 20 : index
    %246 = memref.load %arg3[%c20] : memref<288xf32, #tpu.memory_space<smem>>
    %247 = vector.broadcast %246 : f32 to vector<8x32xf32>
    %248 = arith.mulf %247, %245 : vector<8x32xf32>
    %249 = arith.addf %231, %248 : vector<8x32xf32>
    %c21 = arith.constant 21 : index
    %250 = memref.load %arg3[%c21] : memref<288xf32, #tpu.memory_space<smem>>
    %251 = vector.broadcast %250 : f32 to vector<8x32xf32>
    %252 = arith.mulf %251, %245 : vector<8x32xf32>
    %253 = arith.addf %235, %252 : vector<8x32xf32>
    %c22 = arith.constant 22 : index
    %254 = memref.load %arg3[%c22] : memref<288xf32, #tpu.memory_space<smem>>
    %255 = vector.broadcast %254 : f32 to vector<8x32xf32>
    %256 = arith.mulf %255, %245 : vector<8x32xf32>
    %257 = arith.addf %239, %256 : vector<8x32xf32>
    %c23 = arith.constant 23 : index
    %258 = memref.load %arg3[%c23] : memref<288xf32, #tpu.memory_space<smem>>
    %259 = vector.broadcast %258 : f32 to vector<8x32xf32>
    %260 = arith.mulf %259, %245 : vector<8x32xf32>
    %261 = arith.addf %243, %260 : vector<8x32xf32>
    %c0_63 = arith.constant 0 : index
    %c1_64 = arith.constant 1 : index
    %c0_65 = arith.constant 0 : index
    %c0_66 = arith.constant 0 : index
    %c2_67 = arith.constant 2 : index
    %262 = vector.load %arg2[%c0_63, %c1_64, %c0_65, %c0_66, %c2_67] : memref<1x4x1x10x34xf32, #tpu.memory_space<vmem>>, vector<1x1x1x8x32xf32>
    %263 = vector.shape_cast %262 : vector<1x1x1x8x32xf32> to vector<8x32xf32>
    %c36 = arith.constant 36 : index
    %264 = memref.load %arg3[%c36] : memref<288xf32, #tpu.memory_space<smem>>
    %265 = vector.broadcast %264 : f32 to vector<8x32xf32>
    %266 = arith.mulf %265, %263 : vector<8x32xf32>
    %267 = arith.addf %249, %266 : vector<8x32xf32>
    %c37 = arith.constant 37 : index
    %268 = memref.load %arg3[%c37] : memref<288xf32, #tpu.memory_space<smem>>
    %269 = vector.broadcast %268 : f32 to vector<8x32xf32>
    %270 = arith.mulf %269, %263 : vector<8x32xf32>
    %271 = arith.addf %253, %270 : vector<8x32xf32>
    %c38 = arith.constant 38 : index
    %272 = memref.load %arg3[%c38] : memref<288xf32, #tpu.memory_space<smem>>
    %273 = vector.broadcast %272 : f32 to vector<8x32xf32>
    %274 = arith.mulf %273, %263 : vector<8x32xf32>
    %275 = arith.addf %257, %274 : vector<8x32xf32>
    %c39 = arith.constant 39 : index
    %276 = memref.load %arg3[%c39] : memref<288xf32, #tpu.memory_space<smem>>
    %277 = vector.broadcast %276 : f32 to vector<8x32xf32>
    %278 = arith.mulf %277, %263 : vector<8x32xf32>
    %279 = arith.addf %261, %278 : vector<8x32xf32>
    %c0_68 = arith.constant 0 : index
    %c1_69 = arith.constant 1 : index
    %c0_70 = arith.constant 0 : index
    %c1_71 = arith.constant 1 : index
    %c0_72 = arith.constant 0 : index
    %280 = vector.load %arg2[%c0_68, %c1_69, %c0_70, %c1_71, %c0_72] : memref<1x4x1x10x34xf32, #tpu.memory_space<vmem>>, vector<1x1x1x8x32xf32>
    %281 = vector.shape_cast %280 : vector<1x1x1x8x32xf32> to vector<8x32xf32>
    %c52 = arith.constant 52 : index
    %282 = memref.load %arg3[%c52] : memref<288xf32, #tpu.memory_space<smem>>
    %283 = vector.broadcast %282 : f32 to vector<8x32xf32>
    %284 = arith.mulf %283, %281 : vector<8x32xf32>
    %285 = arith.addf %267, %284 : vector<8x32xf32>
    %c53 = arith.constant 53 : index
    %286 = memref.load %arg3[%c53] : memref<288xf32, #tpu.memory_space<smem>>
    %287 = vector.broadcast %286 : f32 to vector<8x32xf32>
    %288 = arith.mulf %287, %281 : vector<8x32xf32>
    %289 = arith.addf %271, %288 : vector<8x32xf32>
    %c54 = arith.constant 54 : index
    %290 = memref.load %arg3[%c54] : memref<288xf32, #tpu.memory_space<smem>>
    %291 = vector.broadcast %290 : f32 to vector<8x32xf32>
    %292 = arith.mulf %291, %281 : vector<8x32xf32>
    %293 = arith.addf %275, %292 : vector<8x32xf32>
    %c55 = arith.constant 55 : index
    %294 = memref.load %arg3[%c55] : memref<288xf32, #tpu.memory_space<smem>>
    %295 = vector.broadcast %294 : f32 to vector<8x32xf32>
    %296 = arith.mulf %295, %281 : vector<8x32xf32>
    %297 = arith.addf %279, %296 : vector<8x32xf32>
    %c196 = arith.constant 196 : index
    %298 = memref.load %arg3[%c196] : memref<288xf32, #tpu.memory_space<smem>>
    %299 = vector.broadcast %298 : f32 to vector<8x32xf32>
    %300 = arith.mulf %299, %281 : vector<8x32xf32>
    %301 = arith.addf %213, %300 : vector<8x32xf32>
    %c197 = arith.constant 197 : index
    %302 = memref.load %arg3[%c197] : memref<288xf32, #tpu.memory_space<smem>>
    %303 = vector.broadcast %302 : f32 to vector<8x32xf32>
    %304 = arith.mulf %303, %281 : vector<8x32xf32>
    %305 = arith.addf %217, %304 : vector<8x32xf32>
    %c198 = arith.constant 198 : index
    %306 = memref.load %arg3[%c198] : memref<288xf32, #tpu.memory_space<smem>>
    %307 = vector.broadcast %306 : f32 to vector<8x32xf32>
    %308 = arith.mulf %307, %281 : vector<8x32xf32>
    %309 = arith.addf %221, %308 : vector<8x32xf32>
    %c199 = arith.constant 199 : index
    %310 = memref.load %arg3[%c199] : memref<288xf32, #tpu.memory_space<smem>>
    %311 = vector.broadcast %310 : f32 to vector<8x32xf32>
    %312 = arith.mulf %311, %281 : vector<8x32xf32>
    %313 = arith.addf %225, %312 : vector<8x32xf32>
    %c0_73 = arith.constant 0 : index
    %c1_74 = arith.constant 1 : index
    %c0_75 = arith.constant 0 : index
    %c1_76 = arith.constant 1 : index
    %c1_77 = arith.constant 1 : index
    %314 = vector.load %arg2[%c0_73, %c1_74, %c0_75, %c1_76, %c1_77] : memref<1x4x1x10x34xf32, #tpu.memory_space<vmem>>, vector<1x1x1x8x32xf32>
    %315 = vector.shape_cast %314 : vector<1x1x1x8x32xf32> to vector<8x32xf32>
    %c68 = arith.constant 68 : index
    %316 = memref.load %arg3[%c68] : memref<288xf32, #tpu.memory_space<smem>>
    %317 = vector.broadcast %316 : f32 to vector<8x32xf32>
    %318 = arith.mulf %317, %315 : vector<8x32xf32>
    %319 = arith.addf %285, %318 : vector<8x32xf32>
    %c69 = arith.constant 69 : index
    %320 = memref.load %arg3[%c69] : memref<288xf32, #tpu.memory_space<smem>>
    %321 = vector.broadcast %320 : f32 to vector<8x32xf32>
    %322 = arith.mulf %321, %315 : vector<8x32xf32>
    %323 = arith.addf %289, %322 : vector<8x32xf32>
    %c70 = arith.constant 70 : index
    %324 = memref.load %arg3[%c70] : memref<288xf32, #tpu.memory_space<smem>>
    %325 = vector.broadcast %324 : f32 to vector<8x32xf32>
    %326 = arith.mulf %325, %315 : vector<8x32xf32>
    %327 = arith.addf %293, %326 : vector<8x32xf32>
    %c71 = arith.constant 71 : index
    %328 = memref.load %arg3[%c71] : memref<288xf32, #tpu.memory_space<smem>>
    %329 = vector.broadcast %328 : f32 to vector<8x32xf32>
    %330 = arith.mulf %329, %315 : vector<8x32xf32>
    %331 = arith.addf %297, %330 : vector<8x32xf32>
    %c212 = arith.constant 212 : index
    %332 = memref.load %arg3[%c212] : memref<288xf32, #tpu.memory_space<smem>>
    %333 = vector.broadcast %332 : f32 to vector<8x32xf32>
    %334 = arith.mulf %333, %315 : vector<8x32xf32>
    %335 = arith.addf %301, %334 : vector<8x32xf32>
    %c213 = arith.constant 213 : index
    %336 = memref.load %arg3[%c213] : memref<288xf32, #tpu.memory_space<smem>>
    %337 = vector.broadcast %336 : f32 to vector<8x32xf32>
    %338 = arith.mulf %337, %315 : vector<8x32xf32>
    %339 = arith.addf %305, %338 : vector<8x32xf32>
    %c214 = arith.constant 214 : index
    %340 = memref.load %arg3[%c214] : memref<288xf32, #tpu.memory_space<smem>>
    %341 = vector.broadcast %340 : f32 to vector<8x32xf32>
    %342 = arith.mulf %341, %315 : vector<8x32xf32>
    %343 = arith.addf %309, %342 : vector<8x32xf32>
    %c215 = arith.constant 215 : index
    %344 = memref.load %arg3[%c215] : memref<288xf32, #tpu.memory_space<smem>>
    %345 = vector.broadcast %344 : f32 to vector<8x32xf32>
    %346 = arith.mulf %345, %315 : vector<8x32xf32>
    %347 = arith.addf %313, %346 : vector<8x32xf32>
    %c0_78 = arith.constant 0 : index
    %c1_79 = arith.constant 1 : index
    %c0_80 = arith.constant 0 : index
    %c1_81 = arith.constant 1 : index
    %c2_82 = arith.constant 2 : index
    %348 = vector.load %arg2[%c0_78, %c1_79, %c0_80, %c1_81, %c2_82] : memref<1x4x1x10x34xf32, #tpu.memory_space<vmem>>, vector<1x1x1x8x32xf32>
    %349 = vector.shape_cast %348 : vector<1x1x1x8x32xf32> to vector<8x32xf32>
    %c84 = arith.constant 84 : index
    %350 = memref.load %arg3[%c84] : memref<288xf32, #tpu.memory_space<smem>>
    %351 = vector.broadcast %350 : f32 to vector<8x32xf32>
    %352 = arith.mulf %351, %349 : vector<8x32xf32>
    %353 = arith.addf %319, %352 : vector<8x32xf32>
    %c85 = arith.constant 85 : index
    %354 = memref.load %arg3[%c85] : memref<288xf32, #tpu.memory_space<smem>>
    %355 = vector.broadcast %354 : f32 to vector<8x32xf32>
    %356 = arith.mulf %355, %349 : vector<8x32xf32>
    %357 = arith.addf %323, %356 : vector<8x32xf32>
    %c86 = arith.constant 86 : index
    %358 = memref.load %arg3[%c86] : memref<288xf32, #tpu.memory_space<smem>>
    %359 = vector.broadcast %358 : f32 to vector<8x32xf32>
    %360 = arith.mulf %359, %349 : vector<8x32xf32>
    %361 = arith.addf %327, %360 : vector<8x32xf32>
    %c87 = arith.constant 87 : index
    %362 = memref.load %arg3[%c87] : memref<288xf32, #tpu.memory_space<smem>>
    %363 = vector.broadcast %362 : f32 to vector<8x32xf32>
    %364 = arith.mulf %363, %349 : vector<8x32xf32>
    %365 = arith.addf %331, %364 : vector<8x32xf32>
    %c228 = arith.constant 228 : index
    %366 = memref.load %arg3[%c228] : memref<288xf32, #tpu.memory_space<smem>>
    %367 = vector.broadcast %366 : f32 to vector<8x32xf32>
    %368 = arith.mulf %367, %349 : vector<8x32xf32>
    %369 = arith.addf %335, %368 : vector<8x32xf32>
    %c229 = arith.constant 229 : index
    %370 = memref.load %arg3[%c229] : memref<288xf32, #tpu.memory_space<smem>>
    %371 = vector.broadcast %370 : f32 to vector<8x32xf32>
    %372 = arith.mulf %371, %349 : vector<8x32xf32>
    %373 = arith.addf %339, %372 : vector<8x32xf32>
    %c230 = arith.constant 230 : index
    %374 = memref.load %arg3[%c230] : memref<288xf32, #tpu.memory_space<smem>>
    %375 = vector.broadcast %374 : f32 to vector<8x32xf32>
    %376 = arith.mulf %375, %349 : vector<8x32xf32>
    %377 = arith.addf %343, %376 : vector<8x32xf32>
    %c231 = arith.constant 231 : index
    %378 = memref.load %arg3[%c231] : memref<288xf32, #tpu.memory_space<smem>>
    %379 = vector.broadcast %378 : f32 to vector<8x32xf32>
    %380 = arith.mulf %379, %349 : vector<8x32xf32>
    %381 = arith.addf %347, %380 : vector<8x32xf32>
    %c0_83 = arith.constant 0 : index
    %c1_84 = arith.constant 1 : index
    %c0_85 = arith.constant 0 : index
    %c2_86 = arith.constant 2 : index
    %c0_87 = arith.constant 0 : index
    %382 = vector.load %arg2[%c0_83, %c1_84, %c0_85, %c2_86, %c0_87] : memref<1x4x1x10x34xf32, #tpu.memory_space<vmem>>, vector<1x1x1x8x32xf32>
    %383 = vector.shape_cast %382 : vector<1x1x1x8x32xf32> to vector<8x32xf32>
    %c244 = arith.constant 244 : index
    %384 = memref.load %arg3[%c244] : memref<288xf32, #tpu.memory_space<smem>>
    %385 = vector.broadcast %384 : f32 to vector<8x32xf32>
    %386 = arith.mulf %385, %383 : vector<8x32xf32>
    %387 = arith.addf %369, %386 : vector<8x32xf32>
    %c245 = arith.constant 245 : index
    %388 = memref.load %arg3[%c245] : memref<288xf32, #tpu.memory_space<smem>>
    %389 = vector.broadcast %388 : f32 to vector<8x32xf32>
    %390 = arith.mulf %389, %383 : vector<8x32xf32>
    %391 = arith.addf %373, %390 : vector<8x32xf32>
    %c246 = arith.constant 246 : index
    %392 = memref.load %arg3[%c246] : memref<288xf32, #tpu.memory_space<smem>>
    %393 = vector.broadcast %392 : f32 to vector<8x32xf32>
    %394 = arith.mulf %393, %383 : vector<8x32xf32>
    %395 = arith.addf %377, %394 : vector<8x32xf32>
    %c247 = arith.constant 247 : index
    %396 = memref.load %arg3[%c247] : memref<288xf32, #tpu.memory_space<smem>>
    %397 = vector.broadcast %396 : f32 to vector<8x32xf32>
    %398 = arith.mulf %397, %383 : vector<8x32xf32>
    %399 = arith.addf %381, %398 : vector<8x32xf32>
    %c0_88 = arith.constant 0 : index
    %c1_89 = arith.constant 1 : index
    %c0_90 = arith.constant 0 : index
    %c2_91 = arith.constant 2 : index
    %c1_92 = arith.constant 1 : index
    %400 = vector.load %arg2[%c0_88, %c1_89, %c0_90, %c2_91, %c1_92] : memref<1x4x1x10x34xf32, #tpu.memory_space<vmem>>, vector<1x1x1x8x32xf32>
    %401 = vector.shape_cast %400 : vector<1x1x1x8x32xf32> to vector<8x32xf32>
    %c260 = arith.constant 260 : index
    %402 = memref.load %arg3[%c260] : memref<288xf32, #tpu.memory_space<smem>>
    %403 = vector.broadcast %402 : f32 to vector<8x32xf32>
    %404 = arith.mulf %403, %401 : vector<8x32xf32>
    %405 = arith.addf %387, %404 : vector<8x32xf32>
    %c261 = arith.constant 261 : index
    %406 = memref.load %arg3[%c261] : memref<288xf32, #tpu.memory_space<smem>>
    %407 = vector.broadcast %406 : f32 to vector<8x32xf32>
    %408 = arith.mulf %407, %401 : vector<8x32xf32>
    %409 = arith.addf %391, %408 : vector<8x32xf32>
    %c262 = arith.constant 262 : index
    %410 = memref.load %arg3[%c262] : memref<288xf32, #tpu.memory_space<smem>>
    %411 = vector.broadcast %410 : f32 to vector<8x32xf32>
    %412 = arith.mulf %411, %401 : vector<8x32xf32>
    %413 = arith.addf %395, %412 : vector<8x32xf32>
    %c263 = arith.constant 263 : index
    %414 = memref.load %arg3[%c263] : memref<288xf32, #tpu.memory_space<smem>>
    %415 = vector.broadcast %414 : f32 to vector<8x32xf32>
    %416 = arith.mulf %415, %401 : vector<8x32xf32>
    %417 = arith.addf %399, %416 : vector<8x32xf32>
    %c0_93 = arith.constant 0 : index
    %c1_94 = arith.constant 1 : index
    %c0_95 = arith.constant 0 : index
    %c2_96 = arith.constant 2 : index
    %c2_97 = arith.constant 2 : index
    %418 = vector.load %arg2[%c0_93, %c1_94, %c0_95, %c2_96, %c2_97] : memref<1x4x1x10x34xf32, #tpu.memory_space<vmem>>, vector<1x1x1x8x32xf32>
    %419 = vector.shape_cast %418 : vector<1x1x1x8x32xf32> to vector<8x32xf32>
    %c276 = arith.constant 276 : index
    %420 = memref.load %arg3[%c276] : memref<288xf32, #tpu.memory_space<smem>>
    %421 = vector.broadcast %420 : f32 to vector<8x32xf32>
    %422 = arith.mulf %421, %419 : vector<8x32xf32>
    %423 = arith.addf %405, %422 : vector<8x32xf32>
    %c277 = arith.constant 277 : index
    %424 = memref.load %arg3[%c277] : memref<288xf32, #tpu.memory_space<smem>>
    %425 = vector.broadcast %424 : f32 to vector<8x32xf32>
    %426 = arith.mulf %425, %419 : vector<8x32xf32>
    %427 = arith.addf %409, %426 : vector<8x32xf32>
    %c278 = arith.constant 278 : index
    %428 = memref.load %arg3[%c278] : memref<288xf32, #tpu.memory_space<smem>>
    %429 = vector.broadcast %428 : f32 to vector<8x32xf32>
    %430 = arith.mulf %429, %419 : vector<8x32xf32>
    %431 = arith.addf %413, %430 : vector<8x32xf32>
    %c279 = arith.constant 279 : index
    %432 = memref.load %arg3[%c279] : memref<288xf32, #tpu.memory_space<smem>>
    %433 = vector.broadcast %432 : f32 to vector<8x32xf32>
    %434 = arith.mulf %433, %419 : vector<8x32xf32>
    %435 = arith.addf %417, %434 : vector<8x32xf32>
    %c0_98 = arith.constant 0 : index
    %c2_99 = arith.constant 2 : index
    %c0_100 = arith.constant 0 : index
    %c0_101 = arith.constant 0 : index
    %c0_102 = arith.constant 0 : index
    %436 = vector.load %arg2[%c0_98, %c2_99, %c0_100, %c0_101, %c0_102] : memref<1x4x1x10x34xf32, #tpu.memory_space<vmem>>, vector<1x1x1x8x32xf32>
    %437 = vector.shape_cast %436 : vector<1x1x1x8x32xf32> to vector<8x32xf32>
    %c8 = arith.constant 8 : index
    %438 = memref.load %arg3[%c8] : memref<288xf32, #tpu.memory_space<smem>>
    %439 = vector.broadcast %438 : f32 to vector<8x32xf32>
    %440 = arith.mulf %439, %437 : vector<8x32xf32>
    %441 = arith.addf %353, %440 : vector<8x32xf32>
    %c9 = arith.constant 9 : index
    %442 = memref.load %arg3[%c9] : memref<288xf32, #tpu.memory_space<smem>>
    %443 = vector.broadcast %442 : f32 to vector<8x32xf32>
    %444 = arith.mulf %443, %437 : vector<8x32xf32>
    %445 = arith.addf %357, %444 : vector<8x32xf32>
    %c10 = arith.constant 10 : index
    %446 = memref.load %arg3[%c10] : memref<288xf32, #tpu.memory_space<smem>>
    %447 = vector.broadcast %446 : f32 to vector<8x32xf32>
    %448 = arith.mulf %447, %437 : vector<8x32xf32>
    %449 = arith.addf %361, %448 : vector<8x32xf32>
    %c11 = arith.constant 11 : index
    %450 = memref.load %arg3[%c11] : memref<288xf32, #tpu.memory_space<smem>>
    %451 = vector.broadcast %450 : f32 to vector<8x32xf32>
    %452 = arith.mulf %451, %437 : vector<8x32xf32>
    %453 = arith.addf %365, %452 : vector<8x32xf32>
    %c0_103 = arith.constant 0 : index
    %c2_104 = arith.constant 2 : index
    %c0_105 = arith.constant 0 : index
    %c0_106 = arith.constant 0 : index
    %c1_107 = arith.constant 1 : index
    %454 = vector.load %arg2[%c0_103, %c2_104, %c0_105, %c0_106, %c1_107] : memref<1x4x1x10x34xf32, #tpu.memory_space<vmem>>, vector<1x1x1x8x32xf32>
    %455 = vector.shape_cast %454 : vector<1x1x1x8x32xf32> to vector<8x32xf32>
    %c24 = arith.constant 24 : index
    %456 = memref.load %arg3[%c24] : memref<288xf32, #tpu.memory_space<smem>>
    %457 = vector.broadcast %456 : f32 to vector<8x32xf32>
    %458 = arith.mulf %457, %455 : vector<8x32xf32>
    %459 = arith.addf %441, %458 : vector<8x32xf32>
    %c25 = arith.constant 25 : index
    %460 = memref.load %arg3[%c25] : memref<288xf32, #tpu.memory_space<smem>>
    %461 = vector.broadcast %460 : f32 to vector<8x32xf32>
    %462 = arith.mulf %461, %455 : vector<8x32xf32>
    %463 = arith.addf %445, %462 : vector<8x32xf32>
    %c26 = arith.constant 26 : index
    %464 = memref.load %arg3[%c26] : memref<288xf32, #tpu.memory_space<smem>>
    %465 = vector.broadcast %464 : f32 to vector<8x32xf32>
    %466 = arith.mulf %465, %455 : vector<8x32xf32>
    %467 = arith.addf %449, %466 : vector<8x32xf32>
    %c27 = arith.constant 27 : index
    %468 = memref.load %arg3[%c27] : memref<288xf32, #tpu.memory_space<smem>>
    %469 = vector.broadcast %468 : f32 to vector<8x32xf32>
    %470 = arith.mulf %469, %455 : vector<8x32xf32>
    %471 = arith.addf %453, %470 : vector<8x32xf32>
    %c0_108 = arith.constant 0 : index
    %c2_109 = arith.constant 2 : index
    %c0_110 = arith.constant 0 : index
    %c0_111 = arith.constant 0 : index
    %c2_112 = arith.constant 2 : index
    %472 = vector.load %arg2[%c0_108, %c2_109, %c0_110, %c0_111, %c2_112] : memref<1x4x1x10x34xf32, #tpu.memory_space<vmem>>, vector<1x1x1x8x32xf32>
    %473 = vector.shape_cast %472 : vector<1x1x1x8x32xf32> to vector<8x32xf32>
    %c40 = arith.constant 40 : index
    %474 = memref.load %arg3[%c40] : memref<288xf32, #tpu.memory_space<smem>>
    %475 = vector.broadcast %474 : f32 to vector<8x32xf32>
    %476 = arith.mulf %475, %473 : vector<8x32xf32>
    %477 = arith.addf %459, %476 : vector<8x32xf32>
    %c41 = arith.constant 41 : index
    %478 = memref.load %arg3[%c41] : memref<288xf32, #tpu.memory_space<smem>>
    %479 = vector.broadcast %478 : f32 to vector<8x32xf32>
    %480 = arith.mulf %479, %473 : vector<8x32xf32>
    %481 = arith.addf %463, %480 : vector<8x32xf32>
    %c42 = arith.constant 42 : index
    %482 = memref.load %arg3[%c42] : memref<288xf32, #tpu.memory_space<smem>>
    %483 = vector.broadcast %482 : f32 to vector<8x32xf32>
    %484 = arith.mulf %483, %473 : vector<8x32xf32>
    %485 = arith.addf %467, %484 : vector<8x32xf32>
    %c43 = arith.constant 43 : index
    %486 = memref.load %arg3[%c43] : memref<288xf32, #tpu.memory_space<smem>>
    %487 = vector.broadcast %486 : f32 to vector<8x32xf32>
    %488 = arith.mulf %487, %473 : vector<8x32xf32>
    %489 = arith.addf %471, %488 : vector<8x32xf32>
    %c0_113 = arith.constant 0 : index
    %c2_114 = arith.constant 2 : index
    %c0_115 = arith.constant 0 : index
    %c1_116 = arith.constant 1 : index
    %c0_117 = arith.constant 0 : index
    %490 = vector.load %arg2[%c0_113, %c2_114, %c0_115, %c1_116, %c0_117] : memref<1x4x1x10x34xf32, #tpu.memory_space<vmem>>, vector<1x1x1x8x32xf32>
    %491 = vector.shape_cast %490 : vector<1x1x1x8x32xf32> to vector<8x32xf32>
    %c56 = arith.constant 56 : index
    %492 = memref.load %arg3[%c56] : memref<288xf32, #tpu.memory_space<smem>>
    %493 = vector.broadcast %492 : f32 to vector<8x32xf32>
    %494 = arith.mulf %493, %491 : vector<8x32xf32>
    %495 = arith.addf %477, %494 : vector<8x32xf32>
    %c57 = arith.constant 57 : index
    %496 = memref.load %arg3[%c57] : memref<288xf32, #tpu.memory_space<smem>>
    %497 = vector.broadcast %496 : f32 to vector<8x32xf32>
    %498 = arith.mulf %497, %491 : vector<8x32xf32>
    %499 = arith.addf %481, %498 : vector<8x32xf32>
    %c58 = arith.constant 58 : index
    %500 = memref.load %arg3[%c58] : memref<288xf32, #tpu.memory_space<smem>>
    %501 = vector.broadcast %500 : f32 to vector<8x32xf32>
    %502 = arith.mulf %501, %491 : vector<8x32xf32>
    %503 = arith.addf %485, %502 : vector<8x32xf32>
    %c59 = arith.constant 59 : index
    %504 = memref.load %arg3[%c59] : memref<288xf32, #tpu.memory_space<smem>>
    %505 = vector.broadcast %504 : f32 to vector<8x32xf32>
    %506 = arith.mulf %505, %491 : vector<8x32xf32>
    %507 = arith.addf %489, %506 : vector<8x32xf32>
    %c200 = arith.constant 200 : index
    %508 = memref.load %arg3[%c200] : memref<288xf32, #tpu.memory_space<smem>>
    %509 = vector.broadcast %508 : f32 to vector<8x32xf32>
    %510 = arith.mulf %509, %491 : vector<8x32xf32>
    %511 = arith.addf %423, %510 : vector<8x32xf32>
    %c201 = arith.constant 201 : index
    %512 = memref.load %arg3[%c201] : memref<288xf32, #tpu.memory_space<smem>>
    %513 = vector.broadcast %512 : f32 to vector<8x32xf32>
    %514 = arith.mulf %513, %491 : vector<8x32xf32>
    %515 = arith.addf %427, %514 : vector<8x32xf32>
    %c202 = arith.constant 202 : index
    %516 = memref.load %arg3[%c202] : memref<288xf32, #tpu.memory_space<smem>>
    %517 = vector.broadcast %516 : f32 to vector<8x32xf32>
    %518 = arith.mulf %517, %491 : vector<8x32xf32>
    %519 = arith.addf %431, %518 : vector<8x32xf32>
    %c203 = arith.constant 203 : index
    %520 = memref.load %arg3[%c203] : memref<288xf32, #tpu.memory_space<smem>>
    %521 = vector.broadcast %520 : f32 to vector<8x32xf32>
    %522 = arith.mulf %521, %491 : vector<8x32xf32>
    %523 = arith.addf %435, %522 : vector<8x32xf32>
    %c0_118 = arith.constant 0 : index
    %c2_119 = arith.constant 2 : index
    %c0_120 = arith.constant 0 : index
    %c1_121 = arith.constant 1 : index
    %c1_122 = arith.constant 1 : index
    %524 = vector.load %arg2[%c0_118, %c2_119, %c0_120, %c1_121, %c1_122] : memref<1x4x1x10x34xf32, #tpu.memory_space<vmem>>, vector<1x1x1x8x32xf32>
    %525 = vector.shape_cast %524 : vector<1x1x1x8x32xf32> to vector<8x32xf32>
    %c72 = arith.constant 72 : index
    %526 = memref.load %arg3[%c72] : memref<288xf32, #tpu.memory_space<smem>>
    %527 = vector.broadcast %526 : f32 to vector<8x32xf32>
    %528 = arith.mulf %527, %525 : vector<8x32xf32>
    %529 = arith.addf %495, %528 : vector<8x32xf32>
    %c73 = arith.constant 73 : index
    %530 = memref.load %arg3[%c73] : memref<288xf32, #tpu.memory_space<smem>>
    %531 = vector.broadcast %530 : f32 to vector<8x32xf32>
    %532 = arith.mulf %531, %525 : vector<8x32xf32>
    %533 = arith.addf %499, %532 : vector<8x32xf32>
    %c74 = arith.constant 74 : index
    %534 = memref.load %arg3[%c74] : memref<288xf32, #tpu.memory_space<smem>>
    %535 = vector.broadcast %534 : f32 to vector<8x32xf32>
    %536 = arith.mulf %535, %525 : vector<8x32xf32>
    %537 = arith.addf %503, %536 : vector<8x32xf32>
    %c75 = arith.constant 75 : index
    %538 = memref.load %arg3[%c75] : memref<288xf32, #tpu.memory_space<smem>>
    %539 = vector.broadcast %538 : f32 to vector<8x32xf32>
    %540 = arith.mulf %539, %525 : vector<8x32xf32>
    %541 = arith.addf %507, %540 : vector<8x32xf32>
    %c216 = arith.constant 216 : index
    %542 = memref.load %arg3[%c216] : memref<288xf32, #tpu.memory_space<smem>>
    %543 = vector.broadcast %542 : f32 to vector<8x32xf32>
    %544 = arith.mulf %543, %525 : vector<8x32xf32>
    %545 = arith.addf %511, %544 : vector<8x32xf32>
    %c217 = arith.constant 217 : index
    %546 = memref.load %arg3[%c217] : memref<288xf32, #tpu.memory_space<smem>>
    %547 = vector.broadcast %546 : f32 to vector<8x32xf32>
    %548 = arith.mulf %547, %525 : vector<8x32xf32>
    %549 = arith.addf %515, %548 : vector<8x32xf32>
    %c218 = arith.constant 218 : index
    %550 = memref.load %arg3[%c218] : memref<288xf32, #tpu.memory_space<smem>>
    %551 = vector.broadcast %550 : f32 to vector<8x32xf32>
    %552 = arith.mulf %551, %525 : vector<8x32xf32>
    %553 = arith.addf %519, %552 : vector<8x32xf32>
    %c219 = arith.constant 219 : index
    %554 = memref.load %arg3[%c219] : memref<288xf32, #tpu.memory_space<smem>>
    %555 = vector.broadcast %554 : f32 to vector<8x32xf32>
    %556 = arith.mulf %555, %525 : vector<8x32xf32>
    %557 = arith.addf %523, %556 : vector<8x32xf32>
    %c0_123 = arith.constant 0 : index
    %c2_124 = arith.constant 2 : index
    %c0_125 = arith.constant 0 : index
    %c1_126 = arith.constant 1 : index
    %c2_127 = arith.constant 2 : index
    %558 = vector.load %arg2[%c0_123, %c2_124, %c0_125, %c1_126, %c2_127] : memref<1x4x1x10x34xf32, #tpu.memory_space<vmem>>, vector<1x1x1x8x32xf32>
    %559 = vector.shape_cast %558 : vector<1x1x1x8x32xf32> to vector<8x32xf32>
    %c88 = arith.constant 88 : index
    %560 = memref.load %arg3[%c88] : memref<288xf32, #tpu.memory_space<smem>>
    %561 = vector.broadcast %560 : f32 to vector<8x32xf32>
    %562 = arith.mulf %561, %559 : vector<8x32xf32>
    %563 = arith.addf %529, %562 : vector<8x32xf32>
    %c89 = arith.constant 89 : index
    %564 = memref.load %arg3[%c89] : memref<288xf32, #tpu.memory_space<smem>>
    %565 = vector.broadcast %564 : f32 to vector<8x32xf32>
    %566 = arith.mulf %565, %559 : vector<8x32xf32>
    %567 = arith.addf %533, %566 : vector<8x32xf32>
    %c90 = arith.constant 90 : index
    %568 = memref.load %arg3[%c90] : memref<288xf32, #tpu.memory_space<smem>>
    %569 = vector.broadcast %568 : f32 to vector<8x32xf32>
    %570 = arith.mulf %569, %559 : vector<8x32xf32>
    %571 = arith.addf %537, %570 : vector<8x32xf32>
    %c91 = arith.constant 91 : index
    %572 = memref.load %arg3[%c91] : memref<288xf32, #tpu.memory_space<smem>>
    %573 = vector.broadcast %572 : f32 to vector<8x32xf32>
    %574 = arith.mulf %573, %559 : vector<8x32xf32>
    %575 = arith.addf %541, %574 : vector<8x32xf32>
    %c232 = arith.constant 232 : index
    %576 = memref.load %arg3[%c232] : memref<288xf32, #tpu.memory_space<smem>>
    %577 = vector.broadcast %576 : f32 to vector<8x32xf32>
    %578 = arith.mulf %577, %559 : vector<8x32xf32>
    %579 = arith.addf %545, %578 : vector<8x32xf32>
    %c233 = arith.constant 233 : index
    %580 = memref.load %arg3[%c233] : memref<288xf32, #tpu.memory_space<smem>>
    %581 = vector.broadcast %580 : f32 to vector<8x32xf32>
    %582 = arith.mulf %581, %559 : vector<8x32xf32>
    %583 = arith.addf %549, %582 : vector<8x32xf32>
    %c234 = arith.constant 234 : index
    %584 = memref.load %arg3[%c234] : memref<288xf32, #tpu.memory_space<smem>>
    %585 = vector.broadcast %584 : f32 to vector<8x32xf32>
    %586 = arith.mulf %585, %559 : vector<8x32xf32>
    %587 = arith.addf %553, %586 : vector<8x32xf32>
    %c235 = arith.constant 235 : index
    %588 = memref.load %arg3[%c235] : memref<288xf32, #tpu.memory_space<smem>>
    %589 = vector.broadcast %588 : f32 to vector<8x32xf32>
    %590 = arith.mulf %589, %559 : vector<8x32xf32>
    %591 = arith.addf %557, %590 : vector<8x32xf32>
    %c0_128 = arith.constant 0 : index
    %c2_129 = arith.constant 2 : index
    %c0_130 = arith.constant 0 : index
    %c2_131 = arith.constant 2 : index
    %c0_132 = arith.constant 0 : index
    %592 = vector.load %arg2[%c0_128, %c2_129, %c0_130, %c2_131, %c0_132] : memref<1x4x1x10x34xf32, #tpu.memory_space<vmem>>, vector<1x1x1x8x32xf32>
    %593 = vector.shape_cast %592 : vector<1x1x1x8x32xf32> to vector<8x32xf32>
    %c248 = arith.constant 248 : index
    %594 = memref.load %arg3[%c248] : memref<288xf32, #tpu.memory_space<smem>>
    %595 = vector.broadcast %594 : f32 to vector<8x32xf32>
    %596 = arith.mulf %595, %593 : vector<8x32xf32>
    %597 = arith.addf %579, %596 : vector<8x32xf32>
    %c249 = arith.constant 249 : index
    %598 = memref.load %arg3[%c249] : memref<288xf32, #tpu.memory_space<smem>>
    %599 = vector.broadcast %598 : f32 to vector<8x32xf32>
    %600 = arith.mulf %599, %593 : vector<8x32xf32>
    %601 = arith.addf %583, %600 : vector<8x32xf32>
    %c250 = arith.constant 250 : index
    %602 = memref.load %arg3[%c250] : memref<288xf32, #tpu.memory_space<smem>>
    %603 = vector.broadcast %602 : f32 to vector<8x32xf32>
    %604 = arith.mulf %603, %593 : vector<8x32xf32>
    %605 = arith.addf %587, %604 : vector<8x32xf32>
    %c251 = arith.constant 251 : index
    %606 = memref.load %arg3[%c251] : memref<288xf32, #tpu.memory_space<smem>>
    %607 = vector.broadcast %606 : f32 to vector<8x32xf32>
    %608 = arith.mulf %607, %593 : vector<8x32xf32>
    %609 = arith.addf %591, %608 : vector<8x32xf32>
    %c0_133 = arith.constant 0 : index
    %c2_134 = arith.constant 2 : index
    %c0_135 = arith.constant 0 : index
    %c2_136 = arith.constant 2 : index
    %c1_137 = arith.constant 1 : index
    %610 = vector.load %arg2[%c0_133, %c2_134, %c0_135, %c2_136, %c1_137] : memref<1x4x1x10x34xf32, #tpu.memory_space<vmem>>, vector<1x1x1x8x32xf32>
    %611 = vector.shape_cast %610 : vector<1x1x1x8x32xf32> to vector<8x32xf32>
    %c264 = arith.constant 264 : index
    %612 = memref.load %arg3[%c264] : memref<288xf32, #tpu.memory_space<smem>>
    %613 = vector.broadcast %612 : f32 to vector<8x32xf32>
    %614 = arith.mulf %613, %611 : vector<8x32xf32>
    %615 = arith.addf %597, %614 : vector<8x32xf32>
    %c265 = arith.constant 265 : index
    %616 = memref.load %arg3[%c265] : memref<288xf32, #tpu.memory_space<smem>>
    %617 = vector.broadcast %616 : f32 to vector<8x32xf32>
    %618 = arith.mulf %617, %611 : vector<8x32xf32>
    %619 = arith.addf %601, %618 : vector<8x32xf32>
    %c266 = arith.constant 266 : index
    %620 = memref.load %arg3[%c266] : memref<288xf32, #tpu.memory_space<smem>>
    %621 = vector.broadcast %620 : f32 to vector<8x32xf32>
    %622 = arith.mulf %621, %611 : vector<8x32xf32>
    %623 = arith.addf %605, %622 : vector<8x32xf32>
    %c267 = arith.constant 267 : index
    %624 = memref.load %arg3[%c267] : memref<288xf32, #tpu.memory_space<smem>>
    %625 = vector.broadcast %624 : f32 to vector<8x32xf32>
    %626 = arith.mulf %625, %611 : vector<8x32xf32>
    %627 = arith.addf %609, %626 : vector<8x32xf32>
    %c0_138 = arith.constant 0 : index
    %c2_139 = arith.constant 2 : index
    %c0_140 = arith.constant 0 : index
    %c2_141 = arith.constant 2 : index
    %c2_142 = arith.constant 2 : index
    %628 = vector.load %arg2[%c0_138, %c2_139, %c0_140, %c2_141, %c2_142] : memref<1x4x1x10x34xf32, #tpu.memory_space<vmem>>, vector<1x1x1x8x32xf32>
    %629 = vector.shape_cast %628 : vector<1x1x1x8x32xf32> to vector<8x32xf32>
    %c280 = arith.constant 280 : index
    %630 = memref.load %arg3[%c280] : memref<288xf32, #tpu.memory_space<smem>>
    %631 = vector.broadcast %630 : f32 to vector<8x32xf32>
    %632 = arith.mulf %631, %629 : vector<8x32xf32>
    %633 = arith.addf %615, %632 : vector<8x32xf32>
    %c281 = arith.constant 281 : index
    %634 = memref.load %arg3[%c281] : memref<288xf32, #tpu.memory_space<smem>>
    %635 = vector.broadcast %634 : f32 to vector<8x32xf32>
    %636 = arith.mulf %635, %629 : vector<8x32xf32>
    %637 = arith.addf %619, %636 : vector<8x32xf32>
    %c282 = arith.constant 282 : index
    %638 = memref.load %arg3[%c282] : memref<288xf32, #tpu.memory_space<smem>>
    %639 = vector.broadcast %638 : f32 to vector<8x32xf32>
    %640 = arith.mulf %639, %629 : vector<8x32xf32>
    %641 = arith.addf %623, %640 : vector<8x32xf32>
    %c283 = arith.constant 283 : index
    %642 = memref.load %arg3[%c283] : memref<288xf32, #tpu.memory_space<smem>>
    %643 = vector.broadcast %642 : f32 to vector<8x32xf32>
    %644 = arith.mulf %643, %629 : vector<8x32xf32>
    %645 = arith.addf %627, %644 : vector<8x32xf32>
    %c0_143 = arith.constant 0 : index
    %c3_144 = arith.constant 3 : index
    %c0_145 = arith.constant 0 : index
    %c0_146 = arith.constant 0 : index
    %c0_147 = arith.constant 0 : index
    %646 = vector.load %arg2[%c0_143, %c3_144, %c0_145, %c0_146, %c0_147] : memref<1x4x1x10x34xf32, #tpu.memory_space<vmem>>, vector<1x1x1x8x32xf32>
    %647 = vector.shape_cast %646 : vector<1x1x1x8x32xf32> to vector<8x32xf32>
    %c12 = arith.constant 12 : index
    %648 = memref.load %arg3[%c12] : memref<288xf32, #tpu.memory_space<smem>>
    %649 = vector.broadcast %648 : f32 to vector<8x32xf32>
    %650 = arith.mulf %649, %647 : vector<8x32xf32>
    %651 = arith.addf %563, %650 : vector<8x32xf32>
    %c13 = arith.constant 13 : index
    %652 = memref.load %arg3[%c13] : memref<288xf32, #tpu.memory_space<smem>>
    %653 = vector.broadcast %652 : f32 to vector<8x32xf32>
    %654 = arith.mulf %653, %647 : vector<8x32xf32>
    %655 = arith.addf %567, %654 : vector<8x32xf32>
    %c14 = arith.constant 14 : index
    %656 = memref.load %arg3[%c14] : memref<288xf32, #tpu.memory_space<smem>>
    %657 = vector.broadcast %656 : f32 to vector<8x32xf32>
    %658 = arith.mulf %657, %647 : vector<8x32xf32>
    %659 = arith.addf %571, %658 : vector<8x32xf32>
    %c15 = arith.constant 15 : index
    %660 = memref.load %arg3[%c15] : memref<288xf32, #tpu.memory_space<smem>>
    %661 = vector.broadcast %660 : f32 to vector<8x32xf32>
    %662 = arith.mulf %661, %647 : vector<8x32xf32>
    %663 = arith.addf %575, %662 : vector<8x32xf32>
    %c0_148 = arith.constant 0 : index
    %c3_149 = arith.constant 3 : index
    %c0_150 = arith.constant 0 : index
    %c0_151 = arith.constant 0 : index
    %c1_152 = arith.constant 1 : index
    %664 = vector.load %arg2[%c0_148, %c3_149, %c0_150, %c0_151, %c1_152] : memref<1x4x1x10x34xf32, #tpu.memory_space<vmem>>, vector<1x1x1x8x32xf32>
    %665 = vector.shape_cast %664 : vector<1x1x1x8x32xf32> to vector<8x32xf32>
    %c28 = arith.constant 28 : index
    %666 = memref.load %arg3[%c28] : memref<288xf32, #tpu.memory_space<smem>>
    %667 = vector.broadcast %666 : f32 to vector<8x32xf32>
    %668 = arith.mulf %667, %665 : vector<8x32xf32>
    %669 = arith.addf %651, %668 : vector<8x32xf32>
    %c29 = arith.constant 29 : index
    %670 = memref.load %arg3[%c29] : memref<288xf32, #tpu.memory_space<smem>>
    %671 = vector.broadcast %670 : f32 to vector<8x32xf32>
    %672 = arith.mulf %671, %665 : vector<8x32xf32>
    %673 = arith.addf %655, %672 : vector<8x32xf32>
    %c30 = arith.constant 30 : index
    %674 = memref.load %arg3[%c30] : memref<288xf32, #tpu.memory_space<smem>>
    %675 = vector.broadcast %674 : f32 to vector<8x32xf32>
    %676 = arith.mulf %675, %665 : vector<8x32xf32>
    %677 = arith.addf %659, %676 : vector<8x32xf32>
    %c31 = arith.constant 31 : index
    %678 = memref.load %arg3[%c31] : memref<288xf32, #tpu.memory_space<smem>>
    %679 = vector.broadcast %678 : f32 to vector<8x32xf32>
    %680 = arith.mulf %679, %665 : vector<8x32xf32>
    %681 = arith.addf %663, %680 : vector<8x32xf32>
    %c0_153 = arith.constant 0 : index
    %c3_154 = arith.constant 3 : index
    %c0_155 = arith.constant 0 : index
    %c0_156 = arith.constant 0 : index
    %c2_157 = arith.constant 2 : index
    %682 = vector.load %arg2[%c0_153, %c3_154, %c0_155, %c0_156, %c2_157] : memref<1x4x1x10x34xf32, #tpu.memory_space<vmem>>, vector<1x1x1x8x32xf32>
    %683 = vector.shape_cast %682 : vector<1x1x1x8x32xf32> to vector<8x32xf32>
    %c44 = arith.constant 44 : index
    %684 = memref.load %arg3[%c44] : memref<288xf32, #tpu.memory_space<smem>>
    %685 = vector.broadcast %684 : f32 to vector<8x32xf32>
    %686 = arith.mulf %685, %683 : vector<8x32xf32>
    %687 = arith.addf %669, %686 : vector<8x32xf32>
    %c45 = arith.constant 45 : index
    %688 = memref.load %arg3[%c45] : memref<288xf32, #tpu.memory_space<smem>>
    %689 = vector.broadcast %688 : f32 to vector<8x32xf32>
    %690 = arith.mulf %689, %683 : vector<8x32xf32>
    %691 = arith.addf %673, %690 : vector<8x32xf32>
    %c46 = arith.constant 46 : index
    %692 = memref.load %arg3[%c46] : memref<288xf32, #tpu.memory_space<smem>>
    %693 = vector.broadcast %692 : f32 to vector<8x32xf32>
    %694 = arith.mulf %693, %683 : vector<8x32xf32>
    %695 = arith.addf %677, %694 : vector<8x32xf32>
    %c47 = arith.constant 47 : index
    %696 = memref.load %arg3[%c47] : memref<288xf32, #tpu.memory_space<smem>>
    %697 = vector.broadcast %696 : f32 to vector<8x32xf32>
    %698 = arith.mulf %697, %683 : vector<8x32xf32>
    %699 = arith.addf %681, %698 : vector<8x32xf32>
    %c0_158 = arith.constant 0 : index
    %c3_159 = arith.constant 3 : index
    %c0_160 = arith.constant 0 : index
    %c1_161 = arith.constant 1 : index
    %c0_162 = arith.constant 0 : index
    %700 = vector.load %arg2[%c0_158, %c3_159, %c0_160, %c1_161, %c0_162] : memref<1x4x1x10x34xf32, #tpu.memory_space<vmem>>, vector<1x1x1x8x32xf32>
    %701 = vector.shape_cast %700 : vector<1x1x1x8x32xf32> to vector<8x32xf32>
    %c60 = arith.constant 60 : index
    %702 = memref.load %arg3[%c60] : memref<288xf32, #tpu.memory_space<smem>>
    %703 = vector.broadcast %702 : f32 to vector<8x32xf32>
    %704 = arith.mulf %703, %701 : vector<8x32xf32>
    %705 = arith.addf %687, %704 : vector<8x32xf32>
    %c61 = arith.constant 61 : index
    %706 = memref.load %arg3[%c61] : memref<288xf32, #tpu.memory_space<smem>>
    %707 = vector.broadcast %706 : f32 to vector<8x32xf32>
    %708 = arith.mulf %707, %701 : vector<8x32xf32>
    %709 = arith.addf %691, %708 : vector<8x32xf32>
    %c62 = arith.constant 62 : index
    %710 = memref.load %arg3[%c62] : memref<288xf32, #tpu.memory_space<smem>>
    %711 = vector.broadcast %710 : f32 to vector<8x32xf32>
    %712 = arith.mulf %711, %701 : vector<8x32xf32>
    %713 = arith.addf %695, %712 : vector<8x32xf32>
    %c63 = arith.constant 63 : index
    %714 = memref.load %arg3[%c63] : memref<288xf32, #tpu.memory_space<smem>>
    %715 = vector.broadcast %714 : f32 to vector<8x32xf32>
    %716 = arith.mulf %715, %701 : vector<8x32xf32>
    %717 = arith.addf %699, %716 : vector<8x32xf32>
    %c204 = arith.constant 204 : index
    %718 = memref.load %arg3[%c204] : memref<288xf32, #tpu.memory_space<smem>>
    %719 = vector.broadcast %718 : f32 to vector<8x32xf32>
    %720 = arith.mulf %719, %701 : vector<8x32xf32>
    %721 = arith.addf %633, %720 : vector<8x32xf32>
    %c205 = arith.constant 205 : index
    %722 = memref.load %arg3[%c205] : memref<288xf32, #tpu.memory_space<smem>>
    %723 = vector.broadcast %722 : f32 to vector<8x32xf32>
    %724 = arith.mulf %723, %701 : vector<8x32xf32>
    %725 = arith.addf %637, %724 : vector<8x32xf32>
    %c206 = arith.constant 206 : index
    %726 = memref.load %arg3[%c206] : memref<288xf32, #tpu.memory_space<smem>>
    %727 = vector.broadcast %726 : f32 to vector<8x32xf32>
    %728 = arith.mulf %727, %701 : vector<8x32xf32>
    %729 = arith.addf %641, %728 : vector<8x32xf32>
    %c207 = arith.constant 207 : index
    %730 = memref.load %arg3[%c207] : memref<288xf32, #tpu.memory_space<smem>>
    %731 = vector.broadcast %730 : f32 to vector<8x32xf32>
    %732 = arith.mulf %731, %701 : vector<8x32xf32>
    %733 = arith.addf %645, %732 : vector<8x32xf32>
    %c0_163 = arith.constant 0 : index
    %c3_164 = arith.constant 3 : index
    %c0_165 = arith.constant 0 : index
    %c1_166 = arith.constant 1 : index
    %c1_167 = arith.constant 1 : index
    %734 = vector.load %arg2[%c0_163, %c3_164, %c0_165, %c1_166, %c1_167] : memref<1x4x1x10x34xf32, #tpu.memory_space<vmem>>, vector<1x1x1x8x32xf32>
    %735 = vector.shape_cast %734 : vector<1x1x1x8x32xf32> to vector<8x32xf32>
    %c76 = arith.constant 76 : index
    %736 = memref.load %arg3[%c76] : memref<288xf32, #tpu.memory_space<smem>>
    %737 = vector.broadcast %736 : f32 to vector<8x32xf32>
    %738 = arith.mulf %737, %735 : vector<8x32xf32>
    %739 = arith.addf %705, %738 : vector<8x32xf32>
    %c77 = arith.constant 77 : index
    %740 = memref.load %arg3[%c77] : memref<288xf32, #tpu.memory_space<smem>>
    %741 = vector.broadcast %740 : f32 to vector<8x32xf32>
    %742 = arith.mulf %741, %735 : vector<8x32xf32>
    %743 = arith.addf %709, %742 : vector<8x32xf32>
    %c78 = arith.constant 78 : index
    %744 = memref.load %arg3[%c78] : memref<288xf32, #tpu.memory_space<smem>>
    %745 = vector.broadcast %744 : f32 to vector<8x32xf32>
    %746 = arith.mulf %745, %735 : vector<8x32xf32>
    %747 = arith.addf %713, %746 : vector<8x32xf32>
    %c79 = arith.constant 79 : index
    %748 = memref.load %arg3[%c79] : memref<288xf32, #tpu.memory_space<smem>>
    %749 = vector.broadcast %748 : f32 to vector<8x32xf32>
    %750 = arith.mulf %749, %735 : vector<8x32xf32>
    %751 = arith.addf %717, %750 : vector<8x32xf32>
    %c220 = arith.constant 220 : index
    %752 = memref.load %arg3[%c220] : memref<288xf32, #tpu.memory_space<smem>>
    %753 = vector.broadcast %752 : f32 to vector<8x32xf32>
    %754 = arith.mulf %753, %735 : vector<8x32xf32>
    %755 = arith.addf %721, %754 : vector<8x32xf32>
    %c221 = arith.constant 221 : index
    %756 = memref.load %arg3[%c221] : memref<288xf32, #tpu.memory_space<smem>>
    %757 = vector.broadcast %756 : f32 to vector<8x32xf32>
    %758 = arith.mulf %757, %735 : vector<8x32xf32>
    %759 = arith.addf %725, %758 : vector<8x32xf32>
    %c222 = arith.constant 222 : index
    %760 = memref.load %arg3[%c222] : memref<288xf32, #tpu.memory_space<smem>>
    %761 = vector.broadcast %760 : f32 to vector<8x32xf32>
    %762 = arith.mulf %761, %735 : vector<8x32xf32>
    %763 = arith.addf %729, %762 : vector<8x32xf32>
    %c223 = arith.constant 223 : index
    %764 = memref.load %arg3[%c223] : memref<288xf32, #tpu.memory_space<smem>>
    %765 = vector.broadcast %764 : f32 to vector<8x32xf32>
    %766 = arith.mulf %765, %735 : vector<8x32xf32>
    %767 = arith.addf %733, %766 : vector<8x32xf32>
    %c0_168 = arith.constant 0 : index
    %c3_169 = arith.constant 3 : index
    %c0_170 = arith.constant 0 : index
    %c1_171 = arith.constant 1 : index
    %c2_172 = arith.constant 2 : index
    %768 = vector.load %arg2[%c0_168, %c3_169, %c0_170, %c1_171, %c2_172] : memref<1x4x1x10x34xf32, #tpu.memory_space<vmem>>, vector<1x1x1x8x32xf32>
    %769 = vector.shape_cast %768 : vector<1x1x1x8x32xf32> to vector<8x32xf32>
    %c92 = arith.constant 92 : index
    %770 = memref.load %arg3[%c92] : memref<288xf32, #tpu.memory_space<smem>>
    %771 = vector.broadcast %770 : f32 to vector<8x32xf32>
    %772 = arith.mulf %771, %769 : vector<8x32xf32>
    %773 = arith.addf %739, %772 : vector<8x32xf32>
    %c93 = arith.constant 93 : index
    %774 = memref.load %arg3[%c93] : memref<288xf32, #tpu.memory_space<smem>>
    %775 = vector.broadcast %774 : f32 to vector<8x32xf32>
    %776 = arith.mulf %775, %769 : vector<8x32xf32>
    %777 = arith.addf %743, %776 : vector<8x32xf32>
    %c94 = arith.constant 94 : index
    %778 = memref.load %arg3[%c94] : memref<288xf32, #tpu.memory_space<smem>>
    %779 = vector.broadcast %778 : f32 to vector<8x32xf32>
    %780 = arith.mulf %779, %769 : vector<8x32xf32>
    %781 = arith.addf %747, %780 : vector<8x32xf32>
    %c95 = arith.constant 95 : index
    %782 = memref.load %arg3[%c95] : memref<288xf32, #tpu.memory_space<smem>>
    %783 = vector.broadcast %782 : f32 to vector<8x32xf32>
    %784 = arith.mulf %783, %769 : vector<8x32xf32>
    %785 = arith.addf %751, %784 : vector<8x32xf32>
    %c236 = arith.constant 236 : index
    %786 = memref.load %arg3[%c236] : memref<288xf32, #tpu.memory_space<smem>>
    %787 = vector.broadcast %786 : f32 to vector<8x32xf32>
    %788 = arith.mulf %787, %769 : vector<8x32xf32>
    %789 = arith.addf %755, %788 : vector<8x32xf32>
    %c237 = arith.constant 237 : index
    %790 = memref.load %arg3[%c237] : memref<288xf32, #tpu.memory_space<smem>>
    %791 = vector.broadcast %790 : f32 to vector<8x32xf32>
    %792 = arith.mulf %791, %769 : vector<8x32xf32>
    %793 = arith.addf %759, %792 : vector<8x32xf32>
    %c238 = arith.constant 238 : index
    %794 = memref.load %arg3[%c238] : memref<288xf32, #tpu.memory_space<smem>>
    %795 = vector.broadcast %794 : f32 to vector<8x32xf32>
    %796 = arith.mulf %795, %769 : vector<8x32xf32>
    %797 = arith.addf %763, %796 : vector<8x32xf32>
    %c239 = arith.constant 239 : index
    %798 = memref.load %arg3[%c239] : memref<288xf32, #tpu.memory_space<smem>>
    %799 = vector.broadcast %798 : f32 to vector<8x32xf32>
    %800 = arith.mulf %799, %769 : vector<8x32xf32>
    %801 = arith.addf %767, %800 : vector<8x32xf32>
    %c0_173 = arith.constant 0 : index
    %c3_174 = arith.constant 3 : index
    %c0_175 = arith.constant 0 : index
    %c2_176 = arith.constant 2 : index
    %c0_177 = arith.constant 0 : index
    %802 = vector.load %arg2[%c0_173, %c3_174, %c0_175, %c2_176, %c0_177] : memref<1x4x1x10x34xf32, #tpu.memory_space<vmem>>, vector<1x1x1x8x32xf32>
    %803 = vector.shape_cast %802 : vector<1x1x1x8x32xf32> to vector<8x32xf32>
    %c252 = arith.constant 252 : index
    %804 = memref.load %arg3[%c252] : memref<288xf32, #tpu.memory_space<smem>>
    %805 = vector.broadcast %804 : f32 to vector<8x32xf32>
    %806 = arith.mulf %805, %803 : vector<8x32xf32>
    %807 = arith.addf %789, %806 : vector<8x32xf32>
    %c253 = arith.constant 253 : index
    %808 = memref.load %arg3[%c253] : memref<288xf32, #tpu.memory_space<smem>>
    %809 = vector.broadcast %808 : f32 to vector<8x32xf32>
    %810 = arith.mulf %809, %803 : vector<8x32xf32>
    %811 = arith.addf %793, %810 : vector<8x32xf32>
    %c254 = arith.constant 254 : index
    %812 = memref.load %arg3[%c254] : memref<288xf32, #tpu.memory_space<smem>>
    %813 = vector.broadcast %812 : f32 to vector<8x32xf32>
    %814 = arith.mulf %813, %803 : vector<8x32xf32>
    %815 = arith.addf %797, %814 : vector<8x32xf32>
    %c255 = arith.constant 255 : index
    %816 = memref.load %arg3[%c255] : memref<288xf32, #tpu.memory_space<smem>>
    %817 = vector.broadcast %816 : f32 to vector<8x32xf32>
    %818 = arith.mulf %817, %803 : vector<8x32xf32>
    %819 = arith.addf %801, %818 : vector<8x32xf32>
    %c0_178 = arith.constant 0 : index
    %c3_179 = arith.constant 3 : index
    %c0_180 = arith.constant 0 : index
    %c2_181 = arith.constant 2 : index
    %c1_182 = arith.constant 1 : index
    %820 = vector.load %arg2[%c0_178, %c3_179, %c0_180, %c2_181, %c1_182] : memref<1x4x1x10x34xf32, #tpu.memory_space<vmem>>, vector<1x1x1x8x32xf32>
    %821 = vector.shape_cast %820 : vector<1x1x1x8x32xf32> to vector<8x32xf32>
    %c268 = arith.constant 268 : index
    %822 = memref.load %arg3[%c268] : memref<288xf32, #tpu.memory_space<smem>>
    %823 = vector.broadcast %822 : f32 to vector<8x32xf32>
    %824 = arith.mulf %823, %821 : vector<8x32xf32>
    %825 = arith.addf %807, %824 : vector<8x32xf32>
    %c269 = arith.constant 269 : index
    %826 = memref.load %arg3[%c269] : memref<288xf32, #tpu.memory_space<smem>>
    %827 = vector.broadcast %826 : f32 to vector<8x32xf32>
    %828 = arith.mulf %827, %821 : vector<8x32xf32>
    %829 = arith.addf %811, %828 : vector<8x32xf32>
    %c270 = arith.constant 270 : index
    %830 = memref.load %arg3[%c270] : memref<288xf32, #tpu.memory_space<smem>>
    %831 = vector.broadcast %830 : f32 to vector<8x32xf32>
    %832 = arith.mulf %831, %821 : vector<8x32xf32>
    %833 = arith.addf %815, %832 : vector<8x32xf32>
    %c271 = arith.constant 271 : index
    %834 = memref.load %arg3[%c271] : memref<288xf32, #tpu.memory_space<smem>>
    %835 = vector.broadcast %834 : f32 to vector<8x32xf32>
    %836 = arith.mulf %835, %821 : vector<8x32xf32>
    %837 = arith.addf %819, %836 : vector<8x32xf32>
    %c0_183 = arith.constant 0 : index
    %c3_184 = arith.constant 3 : index
    %c0_185 = arith.constant 0 : index
    %c2_186 = arith.constant 2 : index
    %c2_187 = arith.constant 2 : index
    %838 = vector.load %arg2[%c0_183, %c3_184, %c0_185, %c2_186, %c2_187] : memref<1x4x1x10x34xf32, #tpu.memory_space<vmem>>, vector<1x1x1x8x32xf32>
    %839 = vector.shape_cast %838 : vector<1x1x1x8x32xf32> to vector<8x32xf32>
    %c284 = arith.constant 284 : index
    %840 = memref.load %arg3[%c284] : memref<288xf32, #tpu.memory_space<smem>>
    %841 = vector.broadcast %840 : f32 to vector<8x32xf32>
    %842 = arith.mulf %841, %839 : vector<8x32xf32>
    %843 = arith.addf %825, %842 : vector<8x32xf32>
    %c285 = arith.constant 285 : index
    %844 = memref.load %arg3[%c285] : memref<288xf32, #tpu.memory_space<smem>>
    %845 = vector.broadcast %844 : f32 to vector<8x32xf32>
    %846 = arith.mulf %845, %839 : vector<8x32xf32>
    %847 = arith.addf %829, %846 : vector<8x32xf32>
    %c286 = arith.constant 286 : index
    %848 = memref.load %arg3[%c286] : memref<288xf32, #tpu.memory_space<smem>>
    %849 = vector.broadcast %848 : f32 to vector<8x32xf32>
    %850 = arith.mulf %849, %839 : vector<8x32xf32>
    %851 = arith.addf %833, %850 : vector<8x32xf32>
    %c287 = arith.constant 287 : index
    %852 = memref.load %arg3[%c287] : memref<288xf32, #tpu.memory_space<smem>>
    %853 = vector.broadcast %852 : f32 to vector<8x32xf32>
    %854 = arith.mulf %853, %839 : vector<8x32xf32>
    %855 = arith.addf %837, %854 : vector<8x32xf32>
    %c0_188 = arith.constant 0 : index
    %c0_189 = arith.constant 0 : index
    %c0_190 = arith.constant 0 : index
    %c0_191 = arith.constant 0 : index
    %c0_192 = arith.constant 0 : index
    %856 = vector.load %arg5[%c0_188, %c0_189, %c0_190, %c0_191, %c0_192] : memref<1x4x1x8x64xf32, #tpu.memory_space<vmem>>, vector<1x1x1x8x32xf32>
    %857 = vector.shape_cast %856 : vector<1x1x1x8x32xf32> to vector<8x32xf32>
    %858 = vector.shape_cast %773 : vector<8x32xf32> to vector<1x1x1x8x32xf32>
    tpu.vector_store %arg5[%c0_188, %c0_189, %c0_190, %c0_191, %c0_192], %858 {strides = array<i32>} : memref<1x4x1x8x64xf32, #tpu.memory_space<vmem>>, vector<1x1x1x8x32xf32>,
    %c0_193 = arith.constant 0 : index
    %c1_194 = arith.constant 1 : index
    %c0_195 = arith.constant 0 : index
    %c0_196 = arith.constant 0 : index
    %c0_197 = arith.constant 0 : index
    %859 = vector.load %arg5[%c0_193, %c1_194, %c0_195, %c0_196, %c0_197] : memref<1x4x1x8x64xf32, #tpu.memory_space<vmem>>, vector<1x1x1x8x32xf32>
    %860 = vector.shape_cast %859 : vector<1x1x1x8x32xf32> to vector<8x32xf32>
    %861 = vector.shape_cast %777 : vector<8x32xf32> to vector<1x1x1x8x32xf32>
    tpu.vector_store %arg5[%c0_193, %c1_194, %c0_195, %c0_196, %c0_197], %861 {strides = array<i32>} : memref<1x4x1x8x64xf32, #tpu.memory_space<vmem>>, vector<1x1x1x8x32xf32>,
    %c0_198 = arith.constant 0 : index
    %c2_199 = arith.constant 2 : index
    %c0_200 = arith.constant 0 : index
    %c0_201 = arith.constant 0 : index
    %c0_202 = arith.constant 0 : index
    %862 = vector.load %arg5[%c0_198, %c2_199, %c0_200, %c0_201, %c0_202] : memref<1x4x1x8x64xf32, #tpu.memory_space<vmem>>, vector<1x1x1x8x32xf32>
    %863 = vector.shape_cast %862 : vector<1x1x1x8x32xf32> to vector<8x32xf32>
    %864 = vector.shape_cast %781 : vector<8x32xf32> to vector<1x1x1x8x32xf32>
    tpu.vector_store %arg5[%c0_198, %c2_199, %c0_200, %c0_201, %c0_202], %864 {strides = array<i32>} : memref<1x4x1x8x64xf32, #tpu.memory_space<vmem>>, vector<1x1x1x8x32xf32>,
    %c0_203 = arith.constant 0 : index
    %c3_204 = arith.constant 3 : index
    %c0_205 = arith.constant 0 : index
    %c0_206 = arith.constant 0 : index
    %c0_207 = arith.constant 0 : index
    %865 = vector.load %arg5[%c0_203, %c3_204, %c0_205, %c0_206, %c0_207] : memref<1x4x1x8x64xf32, #tpu.memory_space<vmem>>, vector<1x1x1x8x32xf32>
    %866 = vector.shape_cast %865 : vector<1x1x1x8x32xf32> to vector<8x32xf32>
    %867 = vector.shape_cast %785 : vector<8x32xf32> to vector<1x1x1x8x32xf32>
    tpu.vector_store %arg5[%c0_203, %c3_204, %c0_205, %c0_206, %c0_207], %867 {strides = array<i32>} : memref<1x4x1x8x64xf32, #tpu.memory_space<vmem>>, vector<1x1x1x8x32xf32>,
    %c0_208 = arith.constant 0 : index
    %c0_209 = arith.constant 0 : index
    %c0_210 = arith.constant 0 : index
    %c0_211 = arith.constant 0 : index
    %c32_212 = arith.constant 32 : index
    %868 = vector.load %arg5[%c0_208, %c0_209, %c0_210, %c0_211, %c32_212] : memref<1x4x1x8x64xf32, #tpu.memory_space<vmem>>, vector<1x1x1x8x32xf32>
    %869 = vector.shape_cast %868 : vector<1x1x1x8x32xf32> to vector<8x32xf32>
    %870 = vector.shape_cast %843 : vector<8x32xf32> to vector<1x1x1x8x32xf32>
    tpu.vector_store %arg5[%c0_208, %c0_209, %c0_210, %c0_211, %c32_212], %870 {strides = array<i32>} : memref<1x4x1x8x64xf32, #tpu.memory_space<vmem>>, vector<1x1x1x8x32xf32>,
    %c0_213 = arith.constant 0 : index
    %c1_214 = arith.constant 1 : index
    %c0_215 = arith.constant 0 : index
    %c0_216 = arith.constant 0 : index
    %c32_217 = arith.constant 32 : index
    %871 = vector.load %arg5[%c0_213, %c1_214, %c0_215, %c0_216, %c32_217] : memref<1x4x1x8x64xf32, #tpu.memory_space<vmem>>, vector<1x1x1x8x32xf32>
    %872 = vector.shape_cast %871 : vector<1x1x1x8x32xf32> to vector<8x32xf32>
    %873 = vector.shape_cast %847 : vector<8x32xf32> to vector<1x1x1x8x32xf32>
    tpu.vector_store %arg5[%c0_213, %c1_214, %c0_215, %c0_216, %c32_217], %873 {strides = array<i32>} : memref<1x4x1x8x64xf32, #tpu.memory_space<vmem>>, vector<1x1x1x8x32xf32>,
    %c0_218 = arith.constant 0 : index
    %c2_219 = arith.constant 2 : index
    %c0_220 = arith.constant 0 : index
    %c0_221 = arith.constant 0 : index
    %c32_222 = arith.constant 32 : index
    %874 = vector.load %arg5[%c0_218, %c2_219, %c0_220, %c0_221, %c32_222] : memref<1x4x1x8x64xf32, #tpu.memory_space<vmem>>, vector<1x1x1x8x32xf32>
    %875 = vector.shape_cast %874 : vector<1x1x1x8x32xf32> to vector<8x32xf32>
    %876 = vector.shape_cast %851 : vector<8x32xf32> to vector<1x1x1x8x32xf32>
    tpu.vector_store %arg5[%c0_218, %c2_219, %c0_220, %c0_221, %c32_222], %876 {strides = array<i32>} : memref<1x4x1x8x64xf32, #tpu.memory_space<vmem>>, vector<1x1x1x8x32xf32>,
    %c0_223 = arith.constant 0 : index
    %c3_224 = arith.constant 3 : index
    %c0_225 = arith.constant 0 : index
    %c0_226 = arith.constant 0 : index
    %c32_227 = arith.constant 32 : index
    %877 = vector.load %arg5[%c0_223, %c3_224, %c0_225, %c0_226, %c32_227] : memref<1x4x1x8x64xf32, #tpu.memory_space<vmem>>, vector<1x1x1x8x32xf32>
    %878 = vector.shape_cast %877 : vector<1x1x1x8x32xf32> to vector<8x32xf32>
    %879 = vector.shape_cast %855 : vector<8x32xf32> to vector<1x1x1x8x32xf32>
    tpu.vector_store %arg5[%c0_223, %c3_224, %c0_225, %c0_226, %c32_227], %879 {strides = array<i32>} : memref<1x4x1x8x64xf32, #tpu.memory_space<vmem>>, vector<1x1x1x8x32xf32>,
    return
  }
  func.func @transform_0(%arg0: i32, %arg1: i32) -> (i32, i32, i32, i32, i32) {
    %c0_i32 = arith.constant 0 : i32
    %c0_i32_0 = arith.constant 0 : i32
    %c0_i32_1 = arith.constant 0 : i32
    %c0_i32_2 = arith.constant 0 : i32
    return %arg0, %c0_i32, %arg1, %c0_i32_0, %c0_i32_1 : i32, i32, i32, i32, i32
  }
  func.func @transform_1(%arg0: i32, %arg1: i32) -> i32 {
    %c0_i32 = arith.constant 0 : i32
    %c0_i32_0 = arith.constant 0 : i32
    return %c0_i32 : i32
  }
  func.func @transform_2(%arg0: i32, %arg1: i32) -> i32 {
    %c0_i32 = arith.constant 0 : i32
    %c0_i32_0 = arith.constant 0 : i32
    return %c0_i32 : i32
  }
  func.func @transform_3(%arg0: i32, %arg1: i32) -> (i32, i32, i32, i32, i32) {
    %c0_i32 = arith.constant 0 : i32
    %c0_i32_0 = arith.constant 0 : i32
    %c0_i32_1 = arith.constant 0 : i32
    %c0_i32_2 = arith.constant 0 : i32
    return %arg0, %c0_i32, %arg1, %c0_i32_0, %c0_i32_1 : i32, i32, i32, i32, i32
  }
}

</mosaic_0001>

<llo_original>
// kernel: upsample_forward.1
$region0: #{upsample_forward.1}
  #allocation0 [shape = 'u32[]', space=smem, size = 0x4, offset = 0x4, fixed_abs, tag = 'smem constant byte address 0x4 - core index']
  #allocation1 [shape = 'u32[144,128]{1,0:T(1,128)}', space=vmem, size = 0x12000, scoped, tag = 'internal scratch']
  %s0 = inlined_call_operand.vmem [shape: f32[2,4,2,10,34], index: 0, kind: input, shape index: {}]
  %s1 = inlined_call_operand.vmem [shape: f32[288], index: 1, kind: input, shape index: {}]
  %s2 = inlined_call_operand.vmem [shape: f32[4], index: 2, kind: input, shape index: {}]
  %s3 = inlined_call_operand.vmem [shape: f32[2,4,2,8,64], index: 3, kind: output, shape index: {}]
  %s4 = sld [smem:[#allocation0]]
  $region125: #{upsample_forward.1} parent=0
    _
  %s6 = ssub.s32 1, %s4
  %s7 = scalar_select 0, %s6, %s4
  $region1: #{upsample_forward.1} parent=0
    #allocation2 [shape = 'u8[65536]{0}', space=vmem, size = 0x10000, scoped, tag = 'input window, operand 0']
    #allocation3 [shape = 'u8[1536]{0}', space=smem, size = 0x600, scoped, tag = 'input window, operand 1, single buffered']
    #allocation4 [shape = 's32[2]{0}', space=sflag, size = 0x8, scoped, tag = 'scoped memory for upsample_forward.1']
    #allocation5 [shape = 'u8[512]{0}', space=smem, size = 0x200, scoped, tag = 'input window, operand 2, single buffered']
    #allocation6 [shape = 's32[1]{0}', space=sflag, size = 0x4, scoped, tag = 'scoped memory for upsample_forward.1']
    #allocation7 [shape = 'u8[32768]{0}', space=vmem, size = 0x8000, scoped, tag = 'output window, operand 0']
    %8 = vsyncpa [#allocation4], 0
    %9 = vsyncpa [#allocation6], 0
    loop: start=0, step=1, limit=6
    $region2: #{upsample_forward.1} parent=1 // loop_pre_header
      _
    $region3: #{upsample_forward.1} parent=1 // loop_header
      %s11 = sphi 0, %s15
      %p12 = scmp.ge.s32.totalorder %s11, 6
      %s18 = sphi 0, %s30
      %s19 = sphi 0, %s26
      %s20 = sphi 0, %s18
      %s21 = sphi 0, %s19
      %s22 = sphi 0, %s20
      %s23 = sphi 0, %s21
      %s35 = sphi 0, %s37
      %s38 = sphi 0, %s35
      %s39 = sphi 0, %s38
      %s55 = sphi 0, %s39
      %s59 = sphi 0, %s59
      %s61 = sphi 0, %s59
      %s62 = sphi 0, %s61
      %s76 = sphi 0, %s62
      %s80 = sphi 0, %s80
      %s82 = sphi 0, %s80
      %s83 = sphi 0, %s82
      %s97 = sphi 0, %s83
      %s105 = sphi 0, %s107
      %s108 = sphi 0, %s105
      %s109 = sphi 0, %s108
      %s125 = sphi 0, %s109
    $region4: #{upsample_forward.1} parent=1 // loop_header_branch
      %14 = sbr.rel (%p12) target = $region8
    $region5: #{upsample_forward.1} parent=1 // loop_body
      %s16 = ssub.s32 %s11, 1
      %s17 = ssub.s32 %s11, 2
      %s24 = sadd.s32 1, %s19
      %p25 = scmp.ge.s32.totalorder %s24, 2
      %s26 = scalar_select %p25, 0, %s24
      %s27 = sadd.s32 1, %s18
      %s28 = scalar_select %p25, %s27, %s18
      %p29 = scmp.ge.s32.totalorder %s28, 2
      %s30 = scalar_select %p29, 0, %s28
      %s31 = ssub.s32 %s18, %s30
      %s32 = ssub.s32 %s19, %s26
      %s33 = sor.u32 %s31, %s32
      %p34 = scmp.eq.s32.totalorder %s33, 0
      %s36 = sadd.s32 %s35, 1
      %s37 = scalar_select %p34, %s35, %s36
      %p40 = pneg %p34
      %p41 = scmp.eq.s32.totalorder %s11, 3
      %p42 = por %p40, %p41
      %p43 = scmp.ne.s32.totalorder %s35, %s38
      %p44 = scmp.eq.s32.totalorder %s11, 0
      %p45 = por %p43, %p44
      %p46 = scmp.ne.s32.totalorder %s35, %s38
      %p47 = scmp.eq.s32.totalorder %s16, 3
      %p48 = por %p46, %p47
      %p49 = scmp.ne.s32.totalorder %s38, %s39
      %p50 = scmp.eq.s32.totalorder %s16, 0
      %p51 = por %p49, %p50
      %p52 = scmp.ne.s32.totalorder %s38, %s39
      %p53 = scmp.eq.s32.totalorder %s17, 3
      %p54 = por %p52, %p53
      %p56 = scmp.ne.s32.totalorder %s39, %s55
      %p57 = scmp.eq.s32.totalorder %s17, 0
      %p58 = por %p56, %p57
      %s60 = sadd.s32 %s59, 1
      %p63 = scmp.eq.s32.totalorder %s11, 3
      %p64 = scmp.ne.s32.totalorder %s59, %s61
      %p65 = scmp.eq.s32.totalorder %s11, 0
      %p66 = por %p64, %p65
      %p67 = scmp.ne.s32.totalorder %s59, %s61
      %p68 = scmp.eq.s32.totalorder %s16, 3
      %p69 = por %p67, %p68
      %p70 = scmp.ne.s32.totalorder %s61, %s62
      %p71 = scmp.eq.s32.totalorder %s16, 0
      %p72 = por %p70, %p71
      %p73 = scmp.ne.s32.totalorder %s61, %s62
      %p74 = scmp.eq.s32.totalorder %s17, 3
      %p75 = por %p73, %p74
      %p77 = scmp.ne.s32.totalorder %s62, %s76
      %p78 = scmp.eq.s32.totalorder %s17, 0
      %p79 = por %p77, %p78
      %s81 = sadd.s32 %s80, 1
      %p84 = scmp.eq.s32.totalorder %s11, 3
      %p85 = scmp.ne.s32.totalorder %s80, %s82
      %p86 = scmp.eq.s32.totalorder %s11, 0
      %p87 = por %p85, %p86
      %p88 = scmp.ne.s32.totalorder %s80, %s82
      %p89 = scmp.eq.s32.totalorder %s16, 3
      %p90 = por %p88, %p89
      %p91 = scmp.ne.s32.totalorder %s82, %s83
      %p92 = scmp.eq.s32.totalorder %s16, 0
      %p93 = por %p91, %p92
      %p94 = scmp.ne.s32.totalorder %s82, %s83
      %p95 = scmp.eq.s32.totalorder %s17, 3
      %p96 = por %p94, %p95
      %p98 = scmp.ne.s32.totalorder %s83, %s97
      %p99 = scmp.eq.s32.totalorder %s17, 0
      %p100 = por %p98, %p99
      %s101 = ssub.s32 %s18, %s30
      %s102 = ssub.s32 %s19, %s26
      %s103 = sor.u32 %s101, %s102
      %p104 = scmp.eq.s32.totalorder %s103, 0
      %s106 = sadd.s32 %s105, 1
      %s107 = scalar_select %p104, %s105, %s106
      %p110 = pneg %p104
      %p111 = scmp.eq.s32.totalorder %s11, 3
      %p112 = por %p110, %p111
      %p113 = scmp.ne.s32.totalorder %s105, %s108
      %p114 = scmp.eq.s32.totalorder %s11, 0
      %p115 = por %p113, %p114
      %p116 = scmp.ne.s32.totalorder %s105, %s108
      %p117 = scmp.eq.s32.totalorder %s16, 3
      %p118 = por %p116, %p117
      %p119 = scmp.ne.s32.totalorder %s108, %s109
      %p120 = scmp.eq.s32.totalorder %s16, 0
      %p121 = por %p119, %p120
      %p122 = scmp.ne.s32.totalorder %s108, %s109
      %p123 = scmp.eq.s32.totalorder %s17, 3
      %p124 = por %p122, %p123
      %p126 = scmp.ne.s32.totalorder %s109, %s125
      %p127 = scmp.eq.s32.totalorder %s17, 0
      %p128 = por %p126, %p127
      %p129 = scmp.le.s32.totalorder 1, %s11
      %p130 = scmp.lt.s32.totalorder %s11, 5
      %p131 = pnand %p129, %p130
      %p132 = pneg %p131
      // Predicated region
      $region9: #{upsample_forward.1} parent=5 // pred_check
        _
      $region10: #{upsample_forward.1} parent=5 // pred_check_branch
        %134 = sbr.rel (%p131) target = $region12
      $region11: #{upsample_forward.1} parent=5 // pred_region
        %s135 = ssub.s32 %s11, 1
        // Predicated region
        $region13: #{upsample_forward.1} parent=11 // pred_check
          %p136 = pneg %p72
        $region14: #{upsample_forward.1} parent=11 // pred_check_branch
          %138 = sbr.rel (%p136) target = $region16
        $region15: #{upsample_forward.1} parent=11 // pred_region
          %s140 = ssub.s32 48, 48
          %141 = vsyncadd [#allocation4], %s140
          %s143 = sshll.u32 %s1, 4
          %s144 = int_to_ptr.vmem [resolvable:$true] %s143
          %146 = dma.vmem_to_smem %s144, 48, [#allocation3], [#allocation4]
        $region16: #{upsample_forward.1} parent=11 // pred_fallthru
          _
        // Predicated region
        $region17: #{upsample_forward.1} parent=11 // pred_check
          %p147 = pneg %p93
        $region18: #{upsample_forward.1} parent=11 // pred_check_branch
          %149 = sbr.rel (%p147) target = $region20
        $region19: #{upsample_forward.1} parent=11 // pred_region
          %s151 = ssub.s32 16, 16
          %152 = vsyncadd [#allocation6], %s151
          %s154 = sshll.u32 %s2, 4
          %s155 = int_to_ptr.vmem [resolvable:$true] %s154
          %157 = dma.vmem_to_smem %s155, 16, [#allocation5], [#allocation6]
        $region20: #{upsample_forward.1} parent=11 // pred_fallthru
          _
      $region12: #{upsample_forward.1} parent=5 // pred_fallthru
        _
      %p158 = scmp.lt.s32.totalorder %s11, 4
      // Predicated region
      $region21: #{upsample_forward.1} parent=5 // pred_check
        %p159 = pneg %p158
      $region22: #{upsample_forward.1} parent=5 // pred_check_branch
        %161 = sbr.rel (%p159) target = $region24
      $region23: #{upsample_forward.1} parent=5 // pred_region
        // Predicated region
        $region25: #{upsample_forward.1} parent=23 // pred_check
          %p162 = pneg %p45
        $region26: #{upsample_forward.1} parent=23 // pred_check_branch
          %164 = sbr.rel (%p162) target = $region28
        $region27: #{upsample_forward.1} parent=23 // pred_region
          %s165 = sand.u32 %s35, 1
          %s166 = sand.u32 %s35, 1
          %s167 = smul.addr %s166, 64
          %s168 = scalar_lea.vmem [#allocation2], %s167
          %s169 = smul.addr %s19, 2
          %s170 = smul.addr %s18, 16
          %s171 = sadd.s32 %s169, %s170
          %s172 = smul.addr %s171, 8
          %s173 = scalar_lea.vmem %s0, %s172
          // Predicated region
          $region29: #{upsample_forward.1} parent=27 // pred_check
            _
          $region30: #{upsample_forward.1} parent=27 // pred_check_branch
            %175 = sbr.rel (0) target = $region32
          $region31: #{upsample_forward.1} parent=27 // pred_region
            // Predicated region
            $region33: #{upsample_forward.1} parent=31 // pred_check
              _
            $region34: #{upsample_forward.1} parent=31 // pred_check_branch
              %177 = sbr.rel (0) target = $region36
            $region35: #{upsample_forward.1} parent=31 // pred_region
              // Predicated region
              $region48: #{upsample_forward.1} parent=35 // pred_check
                _
              $region49: #{upsample_forward.1} parent=35 // pred_check_branch
                %207 = sbr.rel (0) target = $region51
              $region50: #{upsample_forward.1} parent=35 // pred_region
                loop: start=0, step=1, limit=1
                $region52: #{upsample_forward.1} parent=50 // loop_pre_header
                  _
                $region53: #{upsample_forward.1} parent=50 // loop_header
                  %s209 = sphi 0, %s213
                  %p210 = scmp.ge.s32.totalorder %s209, 1
                  %s214 = sphi %s173, %s173
                  %s215 = sphi %s168, %s168
                $region54: #{upsample_forward.1} parent=50 // loop_header_branch
                  %212 = sbr.rel (%p210) target = $region58
                $region55: #{upsample_forward.1} parent=50 // loop_body
                  %v216 = vld [vmem:[%s214] sm:$0xff]
                  %217 = vst [vmem:[%s215] sm:$0xff] %v216
                  %v218 = vld [vmem:[%s214 + $0x8] sm:$0xff]
                  %219 = vst [vmem:[%s215 + $0x8] sm:$0xff] %v218
                  %v220 = vld [vmem:[%s214 + $0x20] sm:$0xff]
                  %221 = vst [vmem:[%s215 + $0x10] sm:$0xff] %v220
                  %v222 = vld [vmem:[%s214 + $0x28] sm:$0xff]
                  %223 = vst [vmem:[%s215 + $0x18] sm:$0xff] %v222
                  %v224 = vld [vmem:[%s214 + $0x40] sm:$0xff]
                  %225 = vst [vmem:[%s215 + $0x20] sm:$0xff] %v224
                  %v226 = vld [vmem:[%s214 + $0x48] sm:$0xff]
                  %227 = vst [vmem:[%s215 + $0x28] sm:$0xff] %v226
                  %v228 = vld [vmem:[%s214 + $0x60] sm:$0xff]
                  %229 = vst [vmem:[%s215 + $0x30] sm:$0xff] %v228
                  %v230 = vld [vmem:[%s214 + $0x68] sm:$0xff]
                  %231 = vst [vmem:[%s215 + $0x38] sm:$0xff] %v230
                $region56: #{upsample_forward.1} parent=50 // loop_footer
                  %s213 = sadd.s32 1, %s209
                $region57: #{upsample_forward.1} parent=50 // loop_footer_branch
                  %208 = sbr.rel target = $region53
                $region58: #{upsample_forward.1} parent=50 // loop_exit
                  _
              $region51: #{upsample_forward.1} parent=35 // pred_fallthru
                _
              // Predicated region
              $region59: #{upsample_forward.1} parent=35 // pred_check
                _
              $region60: #{upsample_forward.1} parent=35 // pred_check_branch
                %233 = sbr.rel target = $region62
              $region61: #{upsample_forward.1} parent=35 // pred_region
                _
              $region62: #{upsample_forward.1} parent=35 // pred_fallthru
                _
            $region36: #{upsample_forward.1} parent=31 // pred_fallthru
              _
            // Predicated region
            $region37: #{upsample_forward.1} parent=31 // pred_check
              _
            $region38: #{upsample_forward.1} parent=31 // pred_check_branch
              %179 = sbr.rel target = $region40
            $region39: #{upsample_forward.1} parent=31 // pred_region
              %s181 = ssub.s32 256, 1
              loop: start=0, step=1, limit=1
              $region41: #{upsample_forward.1} parent=39 // loop_pre_header
                _
              $region42: #{upsample_forward.1} parent=39 // loop_header
                %s183 = sphi 0, %s187
                %p184 = scmp.ge.s32.totalorder %s183, 1
                %s188 = sphi %s173, %s173
                %s189 = sphi %s168, %s168
              $region43: #{upsample_forward.1} parent=39 // loop_header_branch
                %186 = sbr.rel (%p184) target = $region47
              $region44: #{upsample_forward.1} parent=39 // loop_body
                %v190 = vld [vmem:[%s188] sm:%s181]
                %191 = vst [vmem:[%s189] sm:%s181] %v190
                %v192 = vld [vmem:[%s188 + $0x8] sm:%s181]
                %193 = vst [vmem:[%s189 + $0x8] sm:%s181] %v192
                %v194 = vld [vmem:[%s188 + $0x20] sm:%s181]
                %195 = vst [vmem:[%s189 + $0x10] sm:%s181] %v194
                %v196 = vld [vmem:[%s188 + $0x28] sm:%s181]
                %197 = vst [vmem:[%s189 + $0x18] sm:%s181] %v196
                %v198 = vld [vmem:[%s188 + $0x40] sm:%s181]
                %199 = vst [vmem:[%s189 + $0x20] sm:%s181] %v198
                %v200 = vld [vmem:[%s188 + $0x48] sm:%s181]
                %201 = vst [vmem:[%s189 + $0x28] sm:%s181] %v200
                %v202 = vld [vmem:[%s188 + $0x60] sm:%s181]
                %203 = vst [vmem:[%s189 + $0x30] sm:%s181] %v202
                %v204 = vld [vmem:[%s188 + $0x68] sm:%s181]
                %205 = vst [vmem:[%s189 + $0x38] sm:%s181] %v204
              $region45: #{upsample_forward.1} parent=39 // loop_footer
                %s187 = sadd.s32 1, %s183
              $region46: #{upsample_forward.1} parent=39 // loop_footer_branch
                %182 = sbr.rel target = $region42
              $region47: #{upsample_forward.1} parent=39 // loop_exit
                _
            $region40: #{upsample_forward.1} parent=31 // pred_fallthru
              _
          $region32: #{upsample_forward.1} parent=27 // pred_fallthru
            _
          %234 = vnop
        $region28: #{upsample_forward.1} parent=23 // pred_fallthru
          _
      $region24: #{upsample_forward.1} parent=5 // pred_fallthru
        _
      %p235 = scmp.le.s32.totalorder 1, %s11
      %p236 = scmp.lt.s32.totalorder %s11, 5
      %p237 = pnand %p235, %p236
      %p238 = pneg %p237
      // Predicated region
      $region63: #{upsample_forward.1} parent=5 // pred_check
        _
      $region64: #{upsample_forward.1} parent=5 // pred_check_branch
        %240 = sbr.rel (%p237) target = $region66
      $region65: #{upsample_forward.1} parent=5 // pred_region
        %s241 = ssub.s32 %s11, 1
        %s242 = sand.u32 %s38, 1
        %s243 = sand.u32 %s38, 1
        %s244 = smul.addr %s243, 64
        %s245 = scalar_lea.vmem [#allocation2], %s244
        // Predicated region
        $region67: #{upsample_forward.1} parent=65 // pred_check
          %p246 = pneg %p51
        $region68: #{upsample_forward.1} parent=65 // pred_check_branch
          %248 = sbr.rel (%p246) target = $region70
        $region69: #{upsample_forward.1} parent=65 // pred_region
          _
        $region70: #{upsample_forward.1} parent=65 // pred_fallthru
          _
        // Predicated region
        $region71: #{upsample_forward.1} parent=65 // pred_check
          %p249 = pneg %p72
        $region72: #{upsample_forward.1} parent=65 // pred_check_branch
          %251 = sbr.rel (%p249) target = $region74
        $region73: #{upsample_forward.1} parent=65 // pred_region
          %252 = dma.done [#allocation4], 48
        $region74: #{upsample_forward.1} parent=65 // pred_fallthru
          _
        // Predicated region
        $region75: #{upsample_forward.1} parent=65 // pred_check
          %p253 = pneg %p93
        $region76: #{upsample_forward.1} parent=65 // pred_check_branch
          %255 = sbr.rel (%p253) target = $region78
        $region77: #{upsample_forward.1} parent=65 // pred_region
          %256 = dma.done [#allocation6], 16
        $region78: #{upsample_forward.1} parent=65 // pred_fallthru
          _
        %257 = sfence
        %s258 = sand.u32 %s38, 1
        %s259 = sand.u32 %s38, 1
        %s260 = smul.addr %s259, 64
        %s261 = scalar_lea.vmem [#allocation2], %s260
        %p262 = pneg %p51
        %p263 = pneg %p48
        %p264 = pneg %p72
        %p265 = pneg %p69
        %p266 = pneg %p93
        %p267 = pneg %p90
        %p268 = pneg %p121
        %p269 = pneg %p118
        %s270 = sand.u32 %s108, 1
        %s271 = sand.u32 %s108, 1
        %s272 = smul.addr %s271, 32
        %s273 = scalar_lea.vmem [#allocation7], %s272
        %s274 = sld [smem:[#allocation5]]
        %v275 = vstv %s274
        %s276 = sld [smem:[#allocation5 + $0x1]]
        %v277 = vstv %s276
        %s278 = sld [smem:[#allocation5 + $0x2]]
        %v279 = vstv %s278
        %s280 = sld [smem:[#allocation5 + $0x3]]
        %v281 = vstv %s280
        %v282 = vld [vmem:[%s245] sm:$0xff]
        %s283 = sld [smem:[#allocation3]]
        %v284 = vstv %s283
        %v285 = vmul.f32 %v284, %v282
        %v286 = vadd.f32 %v275, %v285
        %s287 = sld [smem:[#allocation3 + $0x1]]
        %v288 = vstv %s287
        %v289 = vmul.f32 %v288, %v282
        %v290 = vadd.f32 %v277, %v289
        %s291 = sld [smem:[#allocation3 + $0x2]]
        %v292 = vstv %s291
        %v293 = vmul.f32 %v292, %v282
        %v294 = vadd.f32 %v279, %v293
        %s295 = sld [smem:[#allocation3 + $0x3]]
        %v296 = vstv %s295
        %v297 = vmul.f32 %v296, %v282
        %v298 = vadd.f32 %v281, %v297
        %s299 = sld [smem:[#allocation3 + $0x10]]
        %v300 = vstv %s299
        %v301 = vmul.f32 %v300, %v282
        %303 = vrot.lane.b32.xlu0 %v301, 127
        %v304 = vpop.permute.xlu0 %303
        %v306 = vadd.f32 %v286, %v304
        %s307 = sld [smem:[#allocation3 + $0x11]]
        %v308 = vstv %s307
        %v309 = vmul.f32 %v308, %v282
        %311 = vrot.lane.b32.xlu0 %v309, 127
        %v312 = vpop.permute.xlu0 %311
        %v314 = vadd.f32 %v290, %v312
        %s315 = sld [smem:[#allocation3 + $0x12]]
        %v316 = vstv %s315
        %v317 = vmul.f32 %v316, %v282
        %319 = vrot.lane.b32.xlu0 %v317, 127
        %v320 = vpop.permute.xlu0 %319
        %v322 = vadd.f32 %v294, %v320
        %s323 = sld [smem:[#allocation3 + $0x13]]
        %v324 = vstv %s323
        %v325 = vmul.f32 %v324, %v282
        %327 = vrot.lane.b32.xlu0 %v325, 127
        %v328 = vpop.permute.xlu0 %327
        %v330 = vadd.f32 %v298, %v328
        %s331 = sld [smem:[#allocation3 + $0x20]]
        %v332 = vstv %s331
        %v333 = vmul.f32 %v332, %v282
        %335 = vrot.lane.b32.xlu0 %v333, 126
        %v336 = vpop.permute.xlu0 %335
        %v338 = vadd.f32 %v306, %v336
        %s339 = sld [smem:[#allocation3 + $0x21]]
        %v340 = vstv %s339
        %v341 = vmul.f32 %v340, %v282
        %343 = vrot.lane.b32.xlu0 %v341, 126
        %v344 = vpop.permute.xlu0 %343
        %v346 = vadd.f32 %v314, %v344
        %s347 = sld [smem:[#allocation3 + $0x22]]
        %v348 = vstv %s347
        %v349 = vmul.f32 %v348, %v282
        %351 = vrot.lane.b32.xlu0 %v349, 126
        %v352 = vpop.permute.xlu0 %351
        %v354 = vadd.f32 %v322, %v352
        %s355 = sld [smem:[#allocation3 + $0x23]]
        %v356 = vstv %s355
        %v357 = vmul.f32 %v356, %v282
        %359 = vrot.lane.b32.xlu0 %v357, 126
        %v360 = vpop.permute.xlu0 %359
        %v362 = vadd.f32 %v330, %v360
        %v363 = vld [vmem:[%s245 + $0x1] sm:$0xff]
        %s364 = sld [smem:[#allocation3 + $0x30]]
        %v365 = vstv %s364
        %v366 = vmul.f32 %v365, %v363
        %v367 = vadd.f32 %v338, %v366
        %s368 = sld [smem:[#allocation3 + $0x31]]
        %v369 = vstv %s368
        %v370 = vmul.f32 %v369, %v363
        %v371 = vadd.f32 %v346, %v370
        %s372 = sld [smem:[#allocation3 + $0x32]]
        %v373 = vstv %s372
        %v374 = vmul.f32 %v373, %v363
        %v375 = vadd.f32 %v354, %v374
        %s376 = sld [smem:[#allocation3 + $0x33]]
        %v377 = vstv %s376
        %v378 = vmul.f32 %v377, %v363
        %v379 = vadd.f32 %v362, %v378
        %s380 = sld [smem:[#allocation3 + $0xc0]]
        %v381 = vstv %s380
        %v382 = vmul.f32 %v381, %v363
        %v383 = vadd.f32 %v275, %v382
        %s384 = sld [smem:[#allocation3 + $0xc1]]
        %v385 = vstv %s384
        %v386 = vmul.f32 %v385, %v363
        %v387 = vadd.f32 %v277, %v386
        %s388 = sld [smem:[#allocation3 + $0xc2]]
        %v389 = vstv %s388
        %v390 = vmul.f32 %v389, %v363
        %v391 = vadd.f32 %v279, %v390
        %s392 = sld [smem:[#allocation3 + $0xc3]]
        %v393 = vstv %s392
        %v394 = vmul.f32 %v393, %v363
        %v395 = vadd.f32 %v281, %v394
        %s396 = sld [smem:[#allocation3 + $0x40]]
        %v397 = vstv %s396
        %v398 = vmul.f32 %v397, %v363
        %400 = vrot.lane.b32.xlu0 %v398, 127
        %v401 = vpop.permute.xlu0 %400
        %v403 = vadd.f32 %v367, %v401
        %s404 = sld [smem:[#allocation3 + $0x41]]
        %v405 = vstv %s404
        %v406 = vmul.f32 %v405, %v363
        %408 = vrot.lane.b32.xlu0 %v406, 127
        %v409 = vpop.permute.xlu0 %408
        %v411 = vadd.f32 %v371, %v409
        %s412 = sld [smem:[#allocation3 + $0x42]]
        %v413 = vstv %s412
        %v414 = vmul.f32 %v413, %v363
        %416 = vrot.lane.b32.xlu0 %v414, 127
        %v417 = vpop.permute.xlu0 %416
        %v419 = vadd.f32 %v375, %v417
        %s420 = sld [smem:[#allocation3 + $0x43]]
        %v421 = vstv %s420
        %v422 = vmul.f32 %v421, %v363
        %424 = vrot.lane.b32.xlu0 %v422, 127
        %v425 = vpop.permute.xlu0 %424
        %v427 = vadd.f32 %v379, %v425
        %s428 = sld [smem:[#allocation3 + $0xd0]]
        %v429 = vstv %s428
        %v430 = vmul.f32 %v429, %v363
        %432 = vrot.lane.b32.xlu0 %v430, 127
        %v433 = vpop.permute.xlu0 %432
        %v435 = vadd.f32 %v383, %v433
        %s436 = sld [smem:[#allocation3 + $0xd1]]
        %v437 = vstv %s436
        %v438 = vmul.f32 %v437, %v363
        %440 = vrot.lane.b32.xlu0 %v438, 127
        %v441 = vpop.permute.xlu0 %440
        %v443 = vadd.f32 %v387, %v441
        %s444 = sld [smem:[#allocation3 + $0xd2]]
        %v445 = vstv %s444
        %v446 = vmul.f32 %v445, %v363
        %448 = vrot.lane.b32.xlu0 %v446, 127
        %v449 = vpop.permute.xlu0 %448
        %v451 = vadd.f32 %v391, %v449
        %s452 = sld [smem:[#allocation3 + $0xd3]]
        %v453 = vstv %s452
        %v454 = vmul.f32 %v453, %v363
        %456 = vrot.lane.b32.xlu0 %v454, 127
        %v457 = vpop.permute.xlu0 %456
        %v459 = vadd.f32 %v395, %v457
        %s460 = sld [smem:[#allocation3 + $0x50]]
        %v461 = vstv %s460
        %v462 = vmul.f32 %v461, %v363
        %464 = vrot.lane.b32.xlu0 %v462, 126
        %v465 = vpop.permute.xlu0 %464
        %v467 = vadd.f32 %v403, %v465
        %s468 = sld [smem:[#allocation3 + $0x51]]
        %v469 = vstv %s468
        %v470 = vmul.f32 %v469, %v363
        %472 = vrot.lane.b32.xlu0 %v470, 126
        %v473 = vpop.permute.xlu0 %472
        %v475 = vadd.f32 %v411, %v473
        %s476 = sld [smem:[#allocation3 + $0x52]]
        %v477 = vstv %s476
        %v478 = vmul.f32 %v477, %v363
        %480 = vrot.lane.b32.xlu0 %v478, 126
        %v481 = vpop.permute.xlu0 %480
        %v483 = vadd.f32 %v419, %v481
        %s484 = sld [smem:[#allocation3 + $0x53]]
        %v485 = vstv %s484
        %v486 = vmul.f32 %v485, %v363
        %488 = vrot.lane.b32.xlu0 %v486, 126
        %v489 = vpop.permute.xlu0 %488
        %v491 = vadd.f32 %v427, %v489
        %s492 = sld [smem:[#allocation3 + $0xe0]]
        %v493 = vstv %s492
        %v494 = vmul.f32 %v493, %v363
        %496 = vrot.lane.b32.xlu0 %v494, 126
        %v497 = vpop.permute.xlu0 %496
        %v499 = vadd.f32 %v435, %v497
        %s500 = sld [smem:[#allocation3 + $0xe1]]
        %v501 = vstv %s500
        %v502 = vmul.f32 %v501, %v363
        %504 = vrot.lane.b32.xlu0 %v502, 126
        %v505 = vpop.permute.xlu0 %504
        %v507 = vadd.f32 %v443, %v505
        %s508 = sld [smem:[#allocation3 + $0xe2]]
        %v509 = vstv %s508
        %v510 = vmul.f32 %v509, %v363
        %512 = vrot.lane.b32.xlu0 %v510, 126
        %v513 = vpop.permute.xlu0 %512
        %v515 = vadd.f32 %v451, %v513
        %s516 = sld [smem:[#allocation3 + $0xe3]]
        %v517 = vstv %s516
        %v518 = vmul.f32 %v517, %v363
        %520 = vrot.lane.b32.xlu0 %v518, 126
        %v521 = vpop.permute.xlu0 %520
        %v523 = vadd.f32 %v459, %v521
        %v524 = vld [vmem:[%s245 + $0x2] sm:$0xff]
        %s525 = sld [smem:[#allocation3 + $0xf0]]
        %v526 = vstv %s525
        %v527 = vmul.f32 %v526, %v524
        %v528 = vadd.f32 %v499, %v527
        %s529 = sld [smem:[#allocation3 + $0xf1]]
        %v530 = vstv %s529
        %v531 = vmul.f32 %v530, %v524
        %v532 = vadd.f32 %v507, %v531
        %s533 = sld [smem:[#allocation3 + $0xf2]]
        %v534 = vstv %s533
        %v535 = vmul.f32 %v534, %v524
        %v536 = vadd.f32 %v515, %v535
        %s537 = sld [smem:[#allocation3 + $0xf3]]
        %v538 = vstv %s537
        %v539 = vmul.f32 %v538, %v524
        %v540 = vadd.f32 %v523, %v539
        %s541 = sld [smem:[#allocation3 + $0x100]]
        %v542 = vstv %s541
        %v543 = vmul.f32 %v542, %v524
        %545 = vrot.lane.b32.xlu0 %v543, 127
        %v546 = vpop.permute.xlu0 %545
        %v548 = vadd.f32 %v528, %v546
        %s549 = sld [smem:[#allocation3 + $0x101]]
        %v550 = vstv %s549
        %v551 = vmul.f32 %v550, %v524
        %553 = vrot.lane.b32.xlu0 %v551, 127
        %v554 = vpop.permute.xlu0 %553
        %v556 = vadd.f32 %v532, %v554
        %s557 = sld [smem:[#allocation3 + $0x102]]
        %v558 = vstv %s557
        %v559 = vmul.f32 %v558, %v524
        %561 = vrot.lane.b32.xlu0 %v559, 127
        %v562 = vpop.permute.xlu0 %561
        %v564 = vadd.f32 %v536, %v562
        %s565 = sld [smem:[#allocation3 + $0x103]]
        %v566 = vstv %s565
        %v567 = vmul.f32 %v566, %v524
        %569 = vrot.lane.b32.xlu0 %v567, 127
        %v570 = vpop.permute.xlu0 %569
        %v572 = vadd.f32 %v540, %v570
        %s573 = sld [smem:[#allocation3 + $0x110]]
        %v574 = vstv %s573
        %v575 = vmul.f32 %v574, %v524
        %577 = vrot.lane.b32.xlu0 %v575, 126
        %v578 = vpop.permute.xlu0 %577
        %v580 = vadd.f32 %v548, %v578
        %s581 = sld [smem:[#allocation3 + $0x111]]
        %v582 = vstv %s581
        %v583 = vmul.f32 %v582, %v524
        %585 = vrot.lane.b32.xlu0 %v583, 126
        %v586 = vpop.permute.xlu0 %585
        %v588 = vadd.f32 %v556, %v586
        %s589 = sld [smem:[#allocation3 + $0x112]]
        %v590 = vstv %s589
        %v591 = vmul.f32 %v590, %v524
        %593 = vrot.lane.b32.xlu0 %v591, 126
        %v594 = vpop.permute.xlu0 %593
        %v596 = vadd.f32 %v564, %v594
        %s597 = sld [smem:[#allocation3 + $0x113]]
        %v598 = vstv %s597
        %v599 = vmul.f32 %v598, %v524
        %601 = vrot.lane.b32.xlu0 %v599, 126
        %v602 = vpop.permute.xlu0 %601
        %v604 = vadd.f32 %v572, %v602
        %s605 = scalar_lea.vmem %s245, 16 [#allocation2]
        %v606 = vld [vmem:[%s605] sm:$0xff]
        %s607 = sld [smem:[#allocation3 + $0x4]]
        %v608 = vstv %s607
        %v609 = vmul.f32 %v608, %v606
        %v610 = vadd.f32 %v467, %v609
        %s611 = sld [smem:[#allocation3 + $0x5]]
        %v612 = vstv %s611
        %v613 = vmul.f32 %v612, %v606
        %v614 = vadd.f32 %v475, %v613
        %s615 = sld [smem:[#allocation3 + $0x6]]
        %v616 = vstv %s615
        %v617 = vmul.f32 %v616, %v606
        %v618 = vadd.f32 %v483, %v617
        %s619 = sld [smem:[#allocation3 + $0x7]]
        %v620 = vstv %s619
        %v621 = vmul.f32 %v620, %v606
        %v622 = vadd.f32 %v491, %v621
        %s623 = sld [smem:[#allocation3 + $0x14]]
        %v624 = vstv %s623
        %v625 = vmul.f32 %v624, %v606
        %627 = vrot.lane.b32.xlu0 %v625, 127
        %v628 = vpop.permute.xlu0 %627
        %v630 = vadd.f32 %v610, %v628
        %s631 = sld [smem:[#allocation3 + $0x15]]
        %v632 = vstv %s631
        %v633 = vmul.f32 %v632, %v606
        %635 = vrot.lane.b32.xlu0 %v633, 127
        %v636 = vpop.permute.xlu0 %635
        %v638 = vadd.f32 %v614, %v636
        %s639 = sld [smem:[#allocation3 + $0x16]]
        %v640 = vstv %s639
        %v641 = vmul.f32 %v640, %v606
        %643 = vrot.lane.b32.xlu0 %v641, 127
        %v644 = vpop.permute.xlu0 %643
        %v646 = vadd.f32 %v618, %v644
        %s647 = sld [smem:[#allocation3 + $0x17]]
        %v648 = vstv %s647
        %v649 = vmul.f32 %v648, %v606
        %651 = vrot.lane.b32.xlu0 %v649, 127
        %v652 = vpop.permute.xlu0 %651
        %v654 = vadd.f32 %v622, %v652
        %s655 = sld [smem:[#allocation3 + $0x24]]
        %v656 = vstv %s655
        %v657 = vmul.f32 %v656, %v606
        %659 = vrot.lane.b32.xlu0 %v657, 126
        %v660 = vpop.permute.xlu0 %659
        %v662 = vadd.f32 %v630, %v660
        %s663 = sld [smem:[#allocation3 + $0x25]]
        %v664 = vstv %s663
        %v665 = vmul.f32 %v664, %v606
        %667 = vrot.lane.b32.xlu0 %v665, 126
        %v668 = vpop.permute.xlu0 %667
        %v670 = vadd.f32 %v638, %v668
        %s671 = sld [smem:[#allocation3 + $0x26]]
        %v672 = vstv %s671
        %v673 = vmul.f32 %v672, %v606
        %675 = vrot.lane.b32.xlu0 %v673, 126
        %v676 = vpop.permute.xlu0 %675
        %v678 = vadd.f32 %v646, %v676
        %s679 = sld [smem:[#allocation3 + $0x27]]
        %v680 = vstv %s679
        %v681 = vmul.f32 %v680, %v606
        %683 = vrot.lane.b32.xlu0 %v681, 126
        %v684 = vpop.permute.xlu0 %683
        %v686 = vadd.f32 %v654, %v684
        %v687 = vld [vmem:[%s605 + $0x1] sm:$0xff]
        %s688 = sld [smem:[#allocation3 + $0x34]]
        %v689 = vstv %s688
        %v690 = vmul.f32 %v689, %v687
        %v691 = vadd.f32 %v662, %v690
        %s692 = sld [smem:[#allocation3 + $0x35]]
        %v693 = vstv %s692
        %v694 = vmul.f32 %v693, %v687
        %v695 = vadd.f32 %v670, %v694
        %s696 = sld [smem:[#allocation3 + $0x36]]
        %v697 = vstv %s696
        %v698 = vmul.f32 %v697, %v687
        %v699 = vadd.f32 %v678, %v698
        %s700 = sld [smem:[#allocation3 + $0x37]]
        %v701 = vstv %s700
        %v702 = vmul.f32 %v701, %v687
        %v703 = vadd.f32 %v686, %v702
        %s704 = sld [smem:[#allocation3 + $0xc4]]
        %v705 = vstv %s704
        %v706 = vmul.f32 %v705, %v687
        %v707 = vadd.f32 %v580, %v706
        %s708 = sld [smem:[#allocation3 + $0xc5]]
        %v709 = vstv %s708
        %v710 = vmul.f32 %v709, %v687
        %v711 = vadd.f32 %v588, %v710
        %s712 = sld [smem:[#allocation3 + $0xc6]]
        %v713 = vstv %s712
        %v714 = vmul.f32 %v713, %v687
        %v715 = vadd.f32 %v596, %v714
        %s716 = sld [smem:[#allocation3 + $0xc7]]
        %v717 = vstv %s716
        %v718 = vmul.f32 %v717, %v687
        %v719 = vadd.f32 %v604, %v718
        %s720 = sld [smem:[#allocation3 + $0x44]]
        %v721 = vstv %s720
        %v722 = vmul.f32 %v721, %v687
        %724 = vrot.lane.b32.xlu0 %v722, 127
        %v725 = vpop.permute.xlu0 %724
        %v727 = vadd.f32 %v691, %v725
        %s728 = sld [smem:[#allocation3 + $0x45]]
        %v729 = vstv %s728
        %v730 = vmul.f32 %v729, %v687
        %732 = vrot.lane.b32.xlu0 %v730, 127
        %v733 = vpop.permute.xlu0 %732
        %v735 = vadd.f32 %v695, %v733
        %s736 = sld [smem:[#allocation3 + $0x46]]
        %v737 = vstv %s736
        %v738 = vmul.f32 %v737, %v687
        %740 = vrot.lane.b32.xlu0 %v738, 127
        %v741 = vpop.permute.xlu0 %740
        %v743 = vadd.f32 %v699, %v741
        %s744 = sld [smem:[#allocation3 + $0x47]]
        %v745 = vstv %s744
        %v746 = vmul.f32 %v745, %v687
        %748 = vrot.lane.b32.xlu0 %v746, 127
        %v749 = vpop.permute.xlu0 %748
        %v751 = vadd.f32 %v703, %v749
        %s752 = sld [smem:[#allocation3 + $0xd4]]
        %v753 = vstv %s752
        %v754 = vmul.f32 %v753, %v687
        %756 = vrot.lane.b32.xlu0 %v754, 127
        %v757 = vpop.permute.xlu0 %756
        %v759 = vadd.f32 %v707, %v757
        %s760 = sld [smem:[#allocation3 + $0xd5]]
        %v761 = vstv %s760
        %v762 = vmul.f32 %v761, %v687
        %764 = vrot.lane.b32.xlu0 %v762, 127
        %v765 = vpop.permute.xlu0 %764
        %v767 = vadd.f32 %v711, %v765
        %s768 = sld [smem:[#allocation3 + $0xd6]]
        %v769 = vstv %s768
        %v770 = vmul.f32 %v769, %v687
        %772 = vrot.lane.b32.xlu0 %v770, 127
        %v773 = vpop.permute.xlu0 %772
        %v775 = vadd.f32 %v715, %v773
        %s776 = sld [smem:[#allocation3 + $0xd7]]
        %v777 = vstv %s776
        %v778 = vmul.f32 %v777, %v687
        %780 = vrot.lane.b32.xlu0 %v778, 127
        %v781 = vpop.permute.xlu0 %780
        %v783 = vadd.f32 %v719, %v781
        %s784 = sld [smem:[#allocation3 + $0x54]]
        %v785 = vstv %s784
        %v786 = vmul.f32 %v785, %v687
        %788 = vrot.lane.b32.xlu0 %v786, 126
        %v789 = vpop.permute.xlu0 %788
        %v791 = vadd.f32 %v727, %v789
        %s792 = sld [smem:[#allocation3 + $0x55]]
        %v793 = vstv %s792
        %v794 = vmul.f32 %v793, %v687
        %796 = vrot.lane.b32.xlu0 %v794, 126
        %v797 = vpop.permute.xlu0 %796
        %v799 = vadd.f32 %v735, %v797
        %s800 = sld [smem:[#allocation3 + $0x56]]
        %v801 = vstv %s800
        %v802 = vmul.f32 %v801, %v687
        %804 = vrot.lane.b32.xlu0 %v802, 126
        %v805 = vpop.permute.xlu0 %804
        %v807 = vadd.f32 %v743, %v805
        %s808 = sld [smem:[#allocation3 + $0x57]]
        %v809 = vstv %s808
        %v810 = vmul.f32 %v809, %v687
        %812 = vrot.lane.b32.xlu0 %v810, 126
        %v813 = vpop.permute.xlu0 %812
        %v815 = vadd.f32 %v751, %v813
        %s816 = sld [smem:[#allocation3 + $0xe4]]
        %v817 = vstv %s816
        %v818 = vmul.f32 %v817, %v687
        %820 = vrot.lane.b32.xlu0 %v818, 126
        %v821 = vpop.permute.xlu0 %820
        %v823 = vadd.f32 %v759, %v821
        %s824 = sld [smem:[#allocation3 + $0xe5]]
        %v825 = vstv %s824
        %v826 = vmul.f32 %v825, %v687
        %828 = vrot.lane.b32.xlu0 %v826, 126
        %v829 = vpop.permute.xlu0 %828
        %v831 = vadd.f32 %v767, %v829
        %s832 = sld [smem:[#allocation3 + $0xe6]]
        %v833 = vstv %s832
        %v834 = vmul.f32 %v833, %v687
        %836 = vrot.lane.b32.xlu0 %v834, 126
        %v837 = vpop.permute.xlu0 %836
        %v839 = vadd.f32 %v775, %v837
        %s840 = sld [smem:[#allocation3 + $0xe7]]
        %v841 = vstv %s840
        %v842 = vmul.f32 %v841, %v687
        %844 = vrot.lane.b32.xlu0 %v842, 126
        %v845 = vpop.permute.xlu0 %844
        %v847 = vadd.f32 %v783, %v845
        %v848 = vld [vmem:[%s605 + $0x2] sm:$0xff]
        %s849 = sld [smem:[#allocation3 + $0xf4]]
        %v850 = vstv %s849
        %v851 = vmul.f32 %v850, %v848
        %v852 = vadd.f32 %v823, %v851
        %s853 = sld [smem:[#allocation3 + $0xf5]]
        %v854 = vstv %s853
        %v855 = vmul.f32 %v854, %v848
        %v856 = vadd.f32 %v831, %v855
        %s857 = sld [smem:[#allocation3 + $0xf6]]
        %v858 = vstv %s857
        %v859 = vmul.f32 %v858, %v848
        %v860 = vadd.f32 %v839, %v859
        %s861 = sld [smem:[#allocation3 + $0xf7]]
        %v862 = vstv %s861
        %v863 = vmul.f32 %v862, %v848
        %v864 = vadd.f32 %v847, %v863
        %s865 = sld [smem:[#allocation3 + $0x104]]
        %v866 = vstv %s865
        %v867 = vmul.f32 %v866, %v848
        %869 = vrot.lane.b32.xlu0 %v867, 127
        %v870 = vpop.permute.xlu0 %869
        %v872 = vadd.f32 %v852, %v870
        %s873 = sld [smem:[#allocation3 + $0x105]]
        %v874 = vstv %s873
        %v875 = vmul.f32 %v874, %v848
        %877 = vrot.lane.b32.xlu0 %v875, 127
        %v878 = vpop.permute.xlu0 %877
        %v880 = vadd.f32 %v856, %v878
        %s881 = sld [smem:[#allocation3 + $0x106]]
        %v882 = vstv %s881
        %v883 = vmul.f32 %v882, %v848
        %885 = vrot.lane.b32.xlu0 %v883, 127
        %v886 = vpop.permute.xlu0 %885
        %v888 = vadd.f32 %v860, %v886
        %s889 = sld [smem:[#allocation3 + $0x107]]
        %v890 = vstv %s889
        %v891 = vmul.f32 %v890, %v848
        %893 = vrot.lane.b32.xlu0 %v891, 127
        %v894 = vpop.permute.xlu0 %893
        %v896 = vadd.f32 %v864, %v894
        %s897 = sld [smem:[#allocation3 + $0x114]]
        %v898 = vstv %s897
        %v899 = vmul.f32 %v898, %v848
        %901 = vrot.lane.b32.xlu0 %v899, 126
        %v902 = vpop.permute.xlu0 %901
        %v904 = vadd.f32 %v872, %v902
        %s905 = sld [smem:[#allocation3 + $0x115]]
        %v906 = vstv %s905
        %v907 = vmul.f32 %v906, %v848
        %909 = vrot.lane.b32.xlu0 %v907, 126
        %v910 = vpop.permute.xlu0 %909
        %v912 = vadd.f32 %v880, %v910
        %s913 = sld [smem:[#allocation3 + $0x116]]
        %v914 = vstv %s913
        %v915 = vmul.f32 %v914, %v848
        %917 = vrot.lane.b32.xlu0 %v915, 126
        %v918 = vpop.permute.xlu0 %917
        %v920 = vadd.f32 %v888, %v918
        %s921 = sld [smem:[#allocation3 + $0x117]]
        %v922 = vstv %s921
        %v923 = vmul.f32 %v922, %v848
        %925 = vrot.lane.b32.xlu0 %v923, 126
        %v926 = vpop.permute.xlu0 %925
        %v928 = vadd.f32 %v896, %v926
        %s929 = scalar_lea.vmem %s245, 32 [#allocation2]
        %v930 = vld [vmem:[%s929] sm:$0xff]
        %s931 = sld [smem:[#allocation3 + $0x8]]
        %v932 = vstv %s931
        %v933 = vmul.f32 %v932, %v930
        %v934 = vadd.f32 %v791, %v933
        %s935 = sld [smem:[#allocation3 + $0x9]]
        %v936 = vstv %s935
        %v937 = vmul.f32 %v936, %v930
        %v938 = vadd.f32 %v799, %v937
        %s939 = sld [smem:[#allocation3 + $0xa]]
        %v940 = vstv %s939
        %v941 = vmul.f32 %v940, %v930
        %v942 = vadd.f32 %v807, %v941
        %s943 = sld [smem:[#allocation3 + $0xb]]
        %v944 = vstv %s943
        %v945 = vmul.f32 %v944, %v930
        %v946 = vadd.f32 %v815, %v945
        %s947 = sld [smem:[#allocation3 + $0x18]]
        %v948 = vstv %s947
        %v949 = vmul.f32 %v948, %v930
        %951 = vrot.lane.b32.xlu0 %v949, 127
        %v952 = vpop.permute.xlu0 %951
        %v954 = vadd.f32 %v934, %v952
        %s955 = sld [smem:[#allocation3 + $0x19]]
        %v956 = vstv %s955
        %v957 = vmul.f32 %v956, %v930
        %959 = vrot.lane.b32.xlu0 %v957, 127
        %v960 = vpop.permute.xlu0 %959
        %v962 = vadd.f32 %v938, %v960
        %s963 = sld [smem:[#allocation3 + $0x1a]]
        %v964 = vstv %s963
        %v965 = vmul.f32 %v964, %v930
        %967 = vrot.lane.b32.xlu0 %v965, 127
        %v968 = vpop.permute.xlu0 %967
        %v970 = vadd.f32 %v942, %v968
        %s971 = sld [smem:[#allocation3 + $0x1b]]
        %v972 = vstv %s971
        %v973 = vmul.f32 %v972, %v930
        %975 = vrot.lane.b32.xlu0 %v973, 127
        %v976 = vpop.permute.xlu0 %975
        %v978 = vadd.f32 %v946, %v976
        %s979 = sld [smem:[#allocation3 + $0x28]]
        %v980 = vstv %s979
        %v981 = vmul.f32 %v980, %v930
        %983 = vrot.lane.b32.xlu0 %v981, 126
        %v984 = vpop.permute.xlu0 %983
        %v986 = vadd.f32 %v954, %v984
        %s987 = sld [smem:[#allocation3 + $0x29]]
        %v988 = vstv %s987
        %v989 = vmul.f32 %v988, %v930
        %991 = vrot.lane.b32.xlu0 %v989, 126
        %v992 = vpop.permute.xlu0 %991
        %v994 = vadd.f32 %v962, %v992
        %s995 = sld [smem:[#allocation3 + $0x2a]]
        %v996 = vstv %s995
        %v997 = vmul.f32 %v996, %v930
        %999 = vrot.lane.b32.xlu0 %v997, 126
        %v1000 = vpop.permute.xlu0 %999
        %v1002 = vadd.f32 %v970, %v1000
        %s1003 = sld [smem:[#allocation3 + $0x2b]]
        %v1004 = vstv %s1003
        %v1005 = vmul.f32 %v1004, %v930
        %1007 = vrot.lane.b32.xlu0 %v1005, 126
        %v1008 = vpop.permute.xlu0 %1007
        %v1010 = vadd.f32 %v978, %v1008
        %v1011 = vld [vmem:[%s929 + $0x1] sm:$0xff]
        %s1012 = sld [smem:[#allocation3 + $0x38]]
        %v1013 = vstv %s1012
        %v1014 = vmul.f32 %v1013, %v1011
        %v1015 = vadd.f32 %v986, %v1014
        %s1016 = sld [smem:[#allocation3 + $0x39]]
        %v1017 = vstv %s1016
        %v1018 = vmul.f32 %v1017, %v1011
        %v1019 = vadd.f32 %v994, %v1018
        %s1020 = sld [smem:[#allocation3 + $0x3a]]
        %v1021 = vstv %s1020
        %v1022 = vmul.f32 %v1021, %v1011
        %v1023 = vadd.f32 %v1002, %v1022
        %s1024 = sld [smem:[#allocation3 + $0x3b]]
        %v1025 = vstv %s1024
        %v1026 = vmul.f32 %v1025, %v1011
        %v1027 = vadd.f32 %v1010, %v1026
        %s1028 = sld [smem:[#allocation3 + $0xc8]]
        %v1029 = vstv %s1028
        %v1030 = vmul.f32 %v1029, %v1011
        %v1031 = vadd.f32 %v904, %v1030
        %s1032 = sld [smem:[#allocation3 + $0xc9]]
        %v1033 = vstv %s1032
        %v1034 = vmul.f32 %v1033, %v1011
        %v1035 = vadd.f32 %v912, %v1034
        %s1036 = sld [smem:[#allocation3 + $0xca]]
        %v1037 = vstv %s1036
        %v1038 = vmul.f32 %v1037, %v1011
        %v1039 = vadd.f32 %v920, %v1038
        %s1040 = sld [smem:[#allocation3 + $0xcb]]
        %v1041 = vstv %s1040
        %v1042 = vmul.f32 %v1041, %v1011
        %v1043 = vadd.f32 %v928, %v1042
        %s1044 = sld [smem:[#allocation3 + $0x48]]
        %v1045 = vstv %s1044
        %v1046 = vmul.f32 %v1045, %v1011
        %1048 = vrot.lane.b32.xlu0 %v1046, 127
        %v1049 = vpop.permute.xlu0 %1048
        %v1051 = vadd.f32 %v1015, %v1049
        %s1052 = sld [smem:[#allocation3 + $0x49]]
        %v1053 = vstv %s1052
        %v1054 = vmul.f32 %v1053, %v1011
        %1056 = vrot.lane.b32.xlu0 %v1054, 127
        %v1057 = vpop.permute.xlu0 %1056
        %v1059 = vadd.f32 %v1019, %v1057
        %s1060 = sld [smem:[#allocation3 + $0x4a]]
        %v1061 = vstv %s1060
        %v1062 = vmul.f32 %v1061, %v1011
        %1064 = vrot.lane.b32.xlu0 %v1062, 127
        %v1065 = vpop.permute.xlu0 %1064
        %v1067 = vadd.f32 %v1023, %v1065
        %s1068 = sld [smem:[#allocation3 + $0x4b]]
        %v1069 = vstv %s1068
        %v1070 = vmul.f32 %v1069, %v1011
        %1072 = vrot.lane.b32.xlu0 %v1070, 127
        %v1073 = vpop.permute.xlu0 %1072
        %v1075 = vadd.f32 %v1027, %v1073
        %s1076 = sld [smem:[#allocation3 + $0xd8]]
        %v1077 = vstv %s1076
        %v1078 = vmul.f32 %v1077, %v1011
        %1080 = vrot.lane.b32.xlu0 %v1078, 127
        %v1081 = vpop.permute.xlu0 %1080
        %v1083 = vadd.f32 %v1031, %v1081
        %s1084 = sld [smem:[#allocation3 + $0xd9]]
        %v1085 = vstv %s1084
        %v1086 = vmul.f32 %v1085, %v1011
        %1088 = vrot.lane.b32.xlu0 %v1086, 127
        %v1089 = vpop.permute.xlu0 %1088
        %v1091 = vadd.f32 %v1035, %v1089
        %s1092 = sld [smem:[#allocation3 + $0xda]]
        %v1093 = vstv %s1092
        %v1094 = vmul.f32 %v1093, %v1011
        %1096 = vrot.lane.b32.xlu0 %v1094, 127
        %v1097 = vpop.permute.xlu0 %1096
        %v1099 = vadd.f32 %v1039, %v1097
        %s1100 = sld [smem:[#allocation3 + $0xdb]]
        %v1101 = vstv %s1100
        %v1102 = vmul.f32 %v1101, %v1011
        %1104 = vrot.lane.b32.xlu0 %v1102, 127
        %v1105 = vpop.permute.xlu0 %1104
        %v1107 = vadd.f32 %v1043, %v1105
        %s1108 = sld [smem:[#allocation3 + $0x58]]
        %v1109 = vstv %s1108
        %v1110 = vmul.f32 %v1109, %v1011
        %1112 = vrot.lane.b32.xlu0 %v1110, 126
        %v1113 = vpop.permute.xlu0 %1112
        %v1115 = vadd.f32 %v1051, %v1113
        %s1116 = sld [smem:[#allocation3 + $0x59]]
        %v1117 = vstv %s1116
        %v1118 = vmul.f32 %v1117, %v1011
        %1120 = vrot.lane.b32.xlu0 %v1118, 126
        %v1121 = vpop.permute.xlu0 %1120
        %v1123 = vadd.f32 %v1059, %v1121
        %s1124 = sld [smem:[#allocation3 + $0x5a]]
        %v1125 = vstv %s1124
        %v1126 = vmul.f32 %v1125, %v1011
        %1128 = vrot.lane.b32.xlu0 %v1126, 126
        %v1129 = vpop.permute.xlu0 %1128
        %v1131 = vadd.f32 %v1067, %v1129
        %s1132 = sld [smem:[#allocation3 + $0x5b]]
        %v1133 = vstv %s1132
        %v1134 = vmul.f32 %v1133, %v1011
        %1136 = vrot.lane.b32.xlu0 %v1134, 126
        %v1137 = vpop.permute.xlu0 %1136
        %v1139 = vadd.f32 %v1075, %v1137
        %s1140 = sld [smem:[#allocation3 + $0xe8]]
        %v1141 = vstv %s1140
        %v1142 = vmul.f32 %v1141, %v1011
        %1144 = vrot.lane.b32.xlu0 %v1142, 126
        %v1145 = vpop.permute.xlu0 %1144
        %v1147 = vadd.f32 %v1083, %v1145
        %s1148 = sld [smem:[#allocation3 + $0xe9]]
        %v1149 = vstv %s1148
        %v1150 = vmul.f32 %v1149, %v1011
        %1152 = vrot.lane.b32.xlu0 %v1150, 126
        %v1153 = vpop.permute.xlu0 %1152
        %v1155 = vadd.f32 %v1091, %v1153
        %s1156 = sld [smem:[#allocation3 + $0xea]]
        %v1157 = vstv %s1156
        %v1158 = vmul.f32 %v1157, %v1011
        %1160 = vrot.lane.b32.xlu0 %v1158, 126
        %v1161 = vpop.permute.xlu0 %1160
        %v1163 = vadd.f32 %v1099, %v1161
        %s1164 = sld [smem:[#allocation3 + $0xeb]]
        %v1165 = vstv %s1164
        %v1166 = vmul.f32 %v1165, %v1011
        %1168 = vrot.lane.b32.xlu0 %v1166, 126
        %v1169 = vpop.permute.xlu0 %1168
        %v1171 = vadd.f32 %v1107, %v1169
        %v1172 = vld [vmem:[%s929 + $0x2] sm:$0xff]
        %s1173 = sld [smem:[#allocation3 + $0xf8]]
        %v1174 = vstv %s1173
        %v1175 = vmul.f32 %v1174, %v1172
        %v1176 = vadd.f32 %v1147, %v1175
        %s1177 = sld [smem:[#allocation3 + $0xf9]]
        %v1178 = vstv %s1177
        %v1179 = vmul.f32 %v1178, %v1172
        %v1180 = vadd.f32 %v1155, %v1179
        %s1181 = sld [smem:[#allocation3 + $0xfa]]
        %v1182 = vstv %s1181
        %v1183 = vmul.f32 %v1182, %v1172
        %v1184 = vadd.f32 %v1163, %v1183
        %s1185 = sld [smem:[#allocation3 + $0xfb]]
        %v1186 = vstv %s1185
        %v1187 = vmul.f32 %v1186, %v1172
        %v1188 = vadd.f32 %v1171, %v1187
        %s1189 = sld [smem:[#allocation3 + $0x108]]
        %v1190 = vstv %s1189
        %v1191 = vmul.f32 %v1190, %v1172
        %1193 = vrot.lane.b32.xlu0 %v1191, 127
        %v1194 = vpop.permute.xlu0 %1193
        %v1196 = vadd.f32 %v1176, %v1194
        %s1197 = sld [smem:[#allocation3 + $0x109]]
        %v1198 = vstv %s1197
        %v1199 = vmul.f32 %v1198, %v1172
        %1201 = vrot.lane.b32.xlu0 %v1199, 127
        %v1202 = vpop.permute.xlu0 %1201
        %v1204 = vadd.f32 %v1180, %v1202
        %s1205 = sld [smem:[#allocation3 + $0x10a]]
        %v1206 = vstv %s1205
        %v1207 = vmul.f32 %v1206, %v1172
        %1209 = vrot.lane.b32.xlu0 %v1207, 127
        %v1210 = vpop.permute.xlu0 %1209
        %v1212 = vadd.f32 %v1184, %v1210
        %s1213 = sld [smem:[#allocation3 + $0x10b]]
        %v1214 = vstv %s1213
        %v1215 = vmul.f32 %v1214, %v1172
        %1217 = vrot.lane.b32.xlu0 %v1215, 127
        %v1218 = vpop.permute.xlu0 %1217
        %v1220 = vadd.f32 %v1188, %v1218
        %s1221 = sld [smem:[#allocation3 + $0x118]]
        %v1222 = vstv %s1221
        %v1223 = vmul.f32 %v1222, %v1172
        %1225 = vrot.lane.b32.xlu0 %v1223, 126
        %v1226 = vpop.permute.xlu0 %1225
        %v1228 = vadd.f32 %v1196, %v1226
        %s1229 = sld [smem:[#allocation3 + $0x119]]
        %v1230 = vstv %s1229
        %v1231 = vmul.f32 %v1230, %v1172
        %1233 = vrot.lane.b32.xlu0 %v1231, 126
        %v1234 = vpop.permute.xlu0 %1233
        %v1236 = vadd.f32 %v1204, %v1234
        %s1237 = sld [smem:[#allocation3 + $0x11a]]
        %v1238 = vstv %s1237
        %v1239 = vmul.f32 %v1238, %v1172
        %1241 = vrot.lane.b32.xlu0 %v1239, 126
        %v1242 = vpop.permute.xlu0 %1241
        %v1244 = vadd.f32 %v1212, %v1242
        %s1245 = sld [smem:[#allocation3 + $0x11b]]
        %v1246 = vstv %s1245
        %v1247 = vmul.f32 %v1246, %v1172
        %1249 = vrot.lane.b32.xlu0 %v1247, 126
        %v1250 = vpop.permute.xlu0 %1249
        %v1252 = vadd.f32 %v1220, %v1250
        %s1253 = scalar_lea.vmem %s245, 48 [#allocation2]
        %v1254 = vld [vmem:[%s1253] sm:$0xff]
        %s1255 = sld [smem:[#allocation3 + $0xc]]
        %v1256 = vstv %s1255
        %v1257 = vmul.f32 %v1256, %v1254
        %v1258 = vadd.f32 %v1115, %v1257
        %s1259 = sld [smem:[#allocation3 + $0xd]]
        %v1260 = vstv %s1259
        %v1261 = vmul.f32 %v1260, %v1254
        %v1262 = vadd.f32 %v1123, %v1261
        %s1263 = sld [smem:[#allocation3 + $0xe]]
        %v1264 = vstv %s1263
        %v1265 = vmul.f32 %v1264, %v1254
        %v1266 = vadd.f32 %v1131, %v1265
        %s1267 = sld [smem:[#allocation3 + $0xf]]
        %v1268 = vstv %s1267
        %v1269 = vmul.f32 %v1268, %v1254
        %v1270 = vadd.f32 %v1139, %v1269
        %s1271 = sld [smem:[#allocation3 + $0x1c]]
        %v1272 = vstv %s1271
        %v1273 = vmul.f32 %v1272, %v1254
        %1275 = vrot.lane.b32.xlu0 %v1273, 127
        %v1276 = vpop.permute.xlu0 %1275
        %v1278 = vadd.f32 %v1258, %v1276
        %s1279 = sld [smem:[#allocation3 + $0x1d]]
        %v1280 = vstv %s1279
        %v1281 = vmul.f32 %v1280, %v1254
        %1283 = vrot.lane.b32.xlu0 %v1281, 127
        %v1284 = vpop.permute.xlu0 %1283
        %v1286 = vadd.f32 %v1262, %v1284
        %s1287 = sld [smem:[#allocation3 + $0x1e]]
        %v1288 = vstv %s1287
        %v1289 = vmul.f32 %v1288, %v1254
        %1291 = vrot.lane.b32.xlu0 %v1289, 127
        %v1292 = vpop.permute.xlu0 %1291
        %v1294 = vadd.f32 %v1266, %v1292
        %s1295 = sld [smem:[#allocation3 + $0x1f]]
        %v1296 = vstv %s1295
        %v1297 = vmul.f32 %v1296, %v1254
        %1299 = vrot.lane.b32.xlu0 %v1297, 127
        %v1300 = vpop.permute.xlu0 %1299
        %v1302 = vadd.f32 %v1270, %v1300
        %s1303 = sld [smem:[#allocation3 + $0x2c]]
        %v1304 = vstv %s1303
        %v1305 = vmul.f32 %v1304, %v1254
        %1307 = vrot.lane.b32.xlu0 %v1305, 126
        %v1308 = vpop.permute.xlu0 %1307
        %v1310 = vadd.f32 %v1278, %v1308
        %s1311 = sld [smem:[#allocation3 + $0x2d]]
        %v1312 = vstv %s1311
        %v1313 = vmul.f32 %v1312, %v1254
        %1315 = vrot.lane.b32.xlu0 %v1313, 126
        %v1316 = vpop.permute.xlu0 %1315
        %v1318 = vadd.f32 %v1286, %v1316
        %s1319 = sld [smem:[#allocation3 + $0x2e]]
        %v1320 = vstv %s1319
        %v1321 = vmul.f32 %v1320, %v1254
        %1323 = vrot.lane.b32.xlu0 %v1321, 126
        %v1324 = vpop.permute.xlu0 %1323
        %v1326 = vadd.f32 %v1294, %v1324
        %s1327 = sld [smem:[#allocation3 + $0x2f]]
        %v1328 = vstv %s1327
        %v1329 = vmul.f32 %v1328, %v1254
        %1331 = vrot.lane.b32.xlu0 %v1329, 126
        %v1332 = vpop.permute.xlu0 %1331
        %v1334 = vadd.f32 %v1302, %v1332
        %v1335 = vld [vmem:[%s1253 + $0x1] sm:$0xff]
        %s1336 = sld [smem:[#allocation3 + $0x3c]]
        %v1337 = vstv %s1336
        %v1338 = vmul.f32 %v1337, %v1335
        %v1339 = vadd.f32 %v1310, %v1338
        %s1340 = sld [smem:[#allocation3 + $0x3d]]
        %v1341 = vstv %s1340
        %v1342 = vmul.f32 %v1341, %v1335
        %v1343 = vadd.f32 %v1318, %v1342
        %s1344 = sld [smem:[#allocation3 + $0x3e]]
        %v1345 = vstv %s1344
        %v1346 = vmul.f32 %v1345, %v1335
        %v1347 = vadd.f32 %v1326, %v1346
        %s1348 = sld [smem:[#allocation3 + $0x3f]]
        %v1349 = vstv %s1348
        %v1350 = vmul.f32 %v1349, %v1335
        %v1351 = vadd.f32 %v1334, %v1350
        %s1352 = sld [smem:[#allocation3 + $0xcc]]
        %v1353 = vstv %s1352
        %v1354 = vmul.f32 %v1353, %v1335
        %v1355 = vadd.f32 %v1228, %v1354
        %s1356 = sld [smem:[#allocation3 + $0xcd]]
        %v1357 = vstv %s1356
        %v1358 = vmul.f32 %v1357, %v1335
        %v1359 = vadd.f32 %v1236, %v1358
        %s1360 = sld [smem:[#allocation3 + $0xce]]
        %v1361 = vstv %s1360
        %v1362 = vmul.f32 %v1361, %v1335
        %v1363 = vadd.f32 %v1244, %v1362
        %s1364 = sld [smem:[#allocation3 + $0xcf]]
        %v1365 = vstv %s1364
        %v1366 = vmul.f32 %v1365, %v1335
        %v1367 = vadd.f32 %v1252, %v1366
        %s1368 = sld [smem:[#allocation3 + $0x4c]]
        %v1369 = vstv %s1368
        %v1370 = vmul.f32 %v1369, %v1335
        %1372 = vrot.lane.b32.xlu0 %v1370, 127
        %v1373 = vpop.permute.xlu0 %1372
        %v1375 = vadd.f32 %v1339, %v1373
        %s1376 = sld [smem:[#allocation3 + $0x4d]]
        %v1377 = vstv %s1376
        %v1378 = vmul.f32 %v1377, %v1335
        %1380 = vrot.lane.b32.xlu0 %v1378, 127
        %v1381 = vpop.permute.xlu0 %1380
        %v1383 = vadd.f32 %v1343, %v1381
        %s1384 = sld [smem:[#allocation3 + $0x4e]]
        %v1385 = vstv %s1384
        %v1386 = vmul.f32 %v1385, %v1335
        %1388 = vrot.lane.b32.xlu0 %v1386, 127
        %v1389 = vpop.permute.xlu0 %1388
        %v1391 = vadd.f32 %v1347, %v1389
        %s1392 = sld [smem:[#allocation3 + $0x4f]]
        %v1393 = vstv %s1392
        %v1394 = vmul.f32 %v1393, %v1335
        %1396 = vrot.lane.b32.xlu0 %v1394, 127
        %v1397 = vpop.permute.xlu0 %1396
        %v1399 = vadd.f32 %v1351, %v1397
        %s1400 = sld [smem:[#allocation3 + $0xdc]]
        %v1401 = vstv %s1400
        %v1402 = vmul.f32 %v1401, %v1335
        %1404 = vrot.lane.b32.xlu0 %v1402, 127
        %v1405 = vpop.permute.xlu0 %1404
        %v1407 = vadd.f32 %v1355, %v1405
        %s1408 = sld [smem:[#allocation3 + $0xdd]]
        %v1409 = vstv %s1408
        %v1410 = vmul.f32 %v1409, %v1335
        %1412 = vrot.lane.b32.xlu0 %v1410, 127
        %v1413 = vpop.permute.xlu0 %1412
        %v1415 = vadd.f32 %v1359, %v1413
        %s1416 = sld [smem:[#allocation3 + $0xde]]
        %v1417 = vstv %s1416
        %v1418 = vmul.f32 %v1417, %v1335
        %1420 = vrot.lane.b32.xlu0 %v1418, 127
        %v1421 = vpop.permute.xlu0 %1420
        %v1423 = vadd.f32 %v1363, %v1421
        %s1424 = sld [smem:[#allocation3 + $0xdf]]
        %v1425 = vstv %s1424
        %v1426 = vmul.f32 %v1425, %v1335
        %1428 = vrot.lane.b32.xlu0 %v1426, 127
        %v1429 = vpop.permute.xlu0 %1428
        %v1431 = vadd.f32 %v1367, %v1429
        %s1432 = sld [smem:[#allocation3 + $0x5c]]
        %v1433 = vstv %s1432
        %v1434 = vmul.f32 %v1433, %v1335
        %1436 = vrot.lane.b32.xlu0 %v1434, 126
        %v1437 = vpop.permute.xlu0 %1436
        %v1439 = vadd.f32 %v1375, %v1437
        %s1440 = sld [smem:[#allocation3 + $0x5d]]
        %v1441 = vstv %s1440
        %v1442 = vmul.f32 %v1441, %v1335
        %1444 = vrot.lane.b32.xlu0 %v1442, 126
        %v1445 = vpop.permute.xlu0 %1444
        %v1447 = vadd.f32 %v1383, %v1445
        %s1448 = sld [smem:[#allocation3 + $0x5e]]
        %v1449 = vstv %s1448
        %v1450 = vmul.f32 %v1449, %v1335
        %1452 = vrot.lane.b32.xlu0 %v1450, 126
        %v1453 = vpop.permute.xlu0 %1452
        %v1455 = vadd.f32 %v1391, %v1453
        %s1456 = sld [smem:[#allocation3 + $0x5f]]
        %v1457 = vstv %s1456
        %v1458 = vmul.f32 %v1457, %v1335
        %1460 = vrot.lane.b32.xlu0 %v1458, 126
        %v1461 = vpop.permute.xlu0 %1460
        %v1463 = vadd.f32 %v1399, %v1461
        %s1464 = sld [smem:[#allocation3 + $0xec]]
        %v1465 = vstv %s1464
        %v1466 = vmul.f32 %v1465, %v1335
        %1468 = vrot.lane.b32.xlu0 %v1466, 126
        %v1469 = vpop.permute.xlu0 %1468
        %v1471 = vadd.f32 %v1407, %v1469
        %s1472 = sld [smem:[#allocation3 + $0xed]]
        %v1473 = vstv %s1472
        %v1474 = vmul.f32 %v1473, %v1335
        %1476 = vrot.lane.b32.xlu0 %v1474, 126
        %v1477 = vpop.permute.xlu0 %1476
        %v1479 = vadd.f32 %v1415, %v1477
        %s1480 = sld [smem:[#allocation3 + $0xee]]
        %v1481 = vstv %s1480
        %v1482 = vmul.f32 %v1481, %v1335
        %1484 = vrot.lane.b32.xlu0 %v1482, 126
        %v1485 = vpop.permute.xlu0 %1484
        %v1487 = vadd.f32 %v1423, %v1485
        %s1488 = sld [smem:[#allocation3 + $0xef]]
        %v1489 = vstv %s1488
        %v1490 = vmul.f32 %v1489, %v1335
        %1492 = vrot.lane.b32.xlu0 %v1490, 126
        %v1493 = vpop.permute.xlu0 %1492
        %v1495 = vadd.f32 %v1431, %v1493
        %v1496 = vld [vmem:[%s1253 + $0x2] sm:$0xff]
        %s1497 = sld [smem:[#allocation3 + $0xfc]]
        %v1498 = vstv %s1497
        %v1499 = vmul.f32 %v1498, %v1496
        %v1500 = vadd.f32 %v1471, %v1499
        %s1501 = sld [smem:[#allocation3 + $0xfd]]
        %v1502 = vstv %s1501
        %v1503 = vmul.f32 %v1502, %v1496
        %v1504 = vadd.f32 %v1479, %v1503
        %s1505 = sld [smem:[#allocation3 + $0xfe]]
        %v1506 = vstv %s1505
        %v1507 = vmul.f32 %v1506, %v1496
        %v1508 = vadd.f32 %v1487, %v1507
        %s1509 = sld [smem:[#allocation3 + $0xff]]
        %v1510 = vstv %s1509
        %v1511 = vmul.f32 %v1510, %v1496
        %v1512 = vadd.f32 %v1495, %v1511
        %s1513 = sld [smem:[#allocation3 + $0x10c]]
        %v1514 = vstv %s1513
        %v1515 = vmul.f32 %v1514, %v1496
        %1517 = vrot.lane.b32.xlu0 %v1515, 127
        %v1518 = vpop.permute.xlu0 %1517
        %v1520 = vadd.f32 %v1500, %v1518
        %s1521 = sld [smem:[#allocation3 + $0x10d]]
        %v1522 = vstv %s1521
        %v1523 = vmul.f32 %v1522, %v1496
        %1525 = vrot.lane.b32.xlu0 %v1523, 127
        %v1526 = vpop.permute.xlu0 %1525
        %v1528 = vadd.f32 %v1504, %v1526
        %s1529 = sld [smem:[#allocation3 + $0x10e]]
        %v1530 = vstv %s1529
        %v1531 = vmul.f32 %v1530, %v1496
        %1533 = vrot.lane.b32.xlu0 %v1531, 127
        %v1534 = vpop.permute.xlu0 %1533
        %v1536 = vadd.f32 %v1508, %v1534
        %s1537 = sld [smem:[#allocation3 + $0x10f]]
        %v1538 = vstv %s1537
        %v1539 = vmul.f32 %v1538, %v1496
        %1541 = vrot.lane.b32.xlu0 %v1539, 127
        %v1542 = vpop.permute.xlu0 %1541
        %v1544 = vadd.f32 %v1512, %v1542
        %s1545 = sld [smem:[#allocation3 + $0x11c]]
        %v1546 = vstv %s1545
        %v1547 = vmul.f32 %v1546, %v1496
        %1549 = vrot.lane.b32.xlu0 %v1547, 126
        %v1550 = vpop.permute.xlu0 %1549
        %v1552 = vadd.f32 %v1520, %v1550
        %s1553 = sld [smem:[#allocation3 + $0x11d]]
        %v1554 = vstv %s1553
        %v1555 = vmul.f32 %v1554, %v1496
        %1557 = vrot.lane.b32.xlu0 %v1555, 126
        %v1558 = vpop.permute.xlu0 %1557
        %v1560 = vadd.f32 %v1528, %v1558
        %s1561 = sld [smem:[#allocation3 + $0x11e]]
        %v1562 = vstv %s1561
        %v1563 = vmul.f32 %v1562, %v1496
        %1565 = vrot.lane.b32.xlu0 %v1563, 126
        %v1566 = vpop.permute.xlu0 %1565
        %v1568 = vadd.f32 %v1536, %v1566
        %s1569 = sld [smem:[#allocation3 + $0x11f]]
        %v1570 = vstv %s1569
        %v1571 = vmul.f32 %v1570, %v1496
        %1573 = vrot.lane.b32.xlu0 %v1571, 126
        %v1574 = vpop.permute.xlu0 %1573
        %v1576 = vadd.f32 %v1544, %v1574
        %vm1577 = vcmask 261120
        %1578 = vst.msk [vmem:[%s273] sm:$0xff] %vm1577, %v1439
        %s1579 = scalar_lea.vmem %s273, 8 [#allocation7]
        %1580 = vst.msk [vmem:[%s1579] sm:$0xff] %vm1577, %v1447
        %s1581 = scalar_lea.vmem %s273, 16 [#allocation7]
        %1582 = vst.msk [vmem:[%s1581] sm:$0xff] %vm1577, %v1455
        %s1583 = scalar_lea.vmem %s273, 24 [#allocation7]
        %1584 = vst.msk [vmem:[%s1583] sm:$0xff] %vm1577, %v1463
        %1586 = vrot.lane.b32.xlu0 %v1552, 32
        %v1587 = vpop.permute.xlu0 %1586
        %vm1589 = vcmask 523520
        %1590 = vst.msk [vmem:[%s273] sm:$0xff] %vm1589, %v1587
        %1592 = vrot.lane.b32.xlu0 %v1560, 32
        %v1593 = vpop.permute.xlu0 %1592
        %1595 = vst.msk [vmem:[%s1579] sm:$0xff] %vm1589, %v1593
        %1597 = vrot.lane.b32.xlu0 %v1568, 32
        %v1598 = vpop.permute.xlu0 %1597
        %1600 = vst.msk [vmem:[%s1581] sm:$0xff] %vm1589, %v1598
        %1602 = vrot.lane.b32.xlu0 %v1576, 32
        %v1603 = vpop.permute.xlu0 %1602
        %1605 = vst.msk [vmem:[%s1583] sm:$0xff] %vm1589, %v1603
        %s1606 = sand.u32 %s108, 1
        %s1607 = sand.u32 %s108, 1
        %s1608 = smul.addr %s1607, 32
        %s1609 = scalar_lea.vmem [#allocation7], %s1608
        // Predicated region
        $region79: #{upsample_forward.1} parent=65 // pred_check
          %p1610 = pneg %p118
        $region80: #{upsample_forward.1} parent=65 // pred_check_branch
          %1612 = sbr.rel (%p1610) target = $region82
        $region81: #{upsample_forward.1} parent=65 // pred_region
          %s1613 = smul.addr %s20, 8
          %s1614 = sadd.s32 %s21, %s1613
          %s1615 = smul.addr %s1614, 8
          %s1616 = scalar_lea.vmem %s3, %s1615
          // Predicated region
          $region83: #{upsample_forward.1} parent=81 // pred_check
            _
          $region84: #{upsample_forward.1} parent=81 // pred_check_branch
            %1618 = sbr.rel (0) target = $region86
          $region85: #{upsample_forward.1} parent=81 // pred_region
            // Predicated region
            $region87: #{upsample_forward.1} parent=85 // pred_check
              _
            $region88: #{upsample_forward.1} parent=85 // pred_check_branch
              %1620 = sbr.rel (0) target = $region90
            $region89: #{upsample_forward.1} parent=85 // pred_region
              // Predicated region
              $region102: #{upsample_forward.1} parent=89 // pred_check
                _
              $region103: #{upsample_forward.1} parent=89 // pred_check_branch
                %1642 = sbr.rel (0) target = $region105
              $region104: #{upsample_forward.1} parent=89 // pred_region
                loop: start=0, step=1, limit=1
                $region106: #{upsample_forward.1} parent=104 // loop_pre_header
                  _
                $region107: #{upsample_forward.1} parent=104 // loop_header
                  %s1644 = sphi 0, %s1648
                  %p1645 = scmp.ge.s32.totalorder %s1644, 1
                  %s1649 = sphi %s1609, %s1609
                  %s1650 = sphi %s1616, %s1616
                $region108: #{upsample_forward.1} parent=104 // loop_header_branch
                  %1647 = sbr.rel (%p1645) target = $region112
                $region109: #{upsample_forward.1} parent=104 // loop_body
                  %v1651 = vld [vmem:[%s1649] sm:$0xff]
                  %1652 = vst [vmem:[%s1650] sm:$0xff] %v1651
                  %v1653 = vld [vmem:[%s1649 + $0x8] sm:$0xff]
                  %1654 = vst [vmem:[%s1650 + $0x10] sm:$0xff] %v1653
                  %v1655 = vld [vmem:[%s1649 + $0x10] sm:$0xff]
                  %1656 = vst [vmem:[%s1650 + $0x20] sm:$0xff] %v1655
                  %v1657 = vld [vmem:[%s1649 + $0x18] sm:$0xff]
                  %1658 = vst [vmem:[%s1650 + $0x30] sm:$0xff] %v1657
                $region110: #{upsample_forward.1} parent=104 // loop_footer
                  %s1648 = sadd.s32 1, %s1644
                $region111: #{upsample_forward.1} parent=104 // loop_footer_branch
                  %1643 = sbr.rel target = $region107
                $region112: #{upsample_forward.1} parent=104 // loop_exit
                  _
              $region105: #{upsample_forward.1} parent=89 // pred_fallthru
                _
              // Predicated region
              $region113: #{upsample_forward.1} parent=89 // pred_check
                _
              $region114: #{upsample_forward.1} parent=89 // pred_check_branch
                %1660 = sbr.rel target = $region116
              $region115: #{upsample_forward.1} parent=89 // pred_region
                _
              $region116: #{upsample_forward.1} parent=89 // pred_fallthru
                _
            $region90: #{upsample_forward.1} parent=85 // pred_fallthru
              _
            // Predicated region
            $region91: #{upsample_forward.1} parent=85 // pred_check
              _
            $region92: #{upsample_forward.1} parent=85 // pred_check_branch
              %1622 = sbr.rel target = $region94
            $region93: #{upsample_forward.1} parent=85 // pred_region
              %s1624 = ssub.s32 256, 1
              loop: start=0, step=1, limit=1
              $region95: #{upsample_forward.1} parent=93 // loop_pre_header
                _
              $region96: #{upsample_forward.1} parent=93 // loop_header
                %s1626 = sphi 0, %s1630
                %p1627 = scmp.ge.s32.totalorder %s1626, 1
                %s1631 = sphi %s1609, %s1609
                %s1632 = sphi %s1616, %s1616
              $region97: #{upsample_forward.1} parent=93 // loop_header_branch
                %1629 = sbr.rel (%p1627) target = $region101
              $region98: #{upsample_forward.1} parent=93 // loop_body
                %v1633 = vld [vmem:[%s1631] sm:%s1624]
                %1634 = vst [vmem:[%s1632] sm:%s1624] %v1633
                %v1635 = vld [vmem:[%s1631 + $0x8] sm:%s1624]
                %1636 = vst [vmem:[%s1632 + $0x10] sm:%s1624] %v1635
                %v1637 = vld [vmem:[%s1631 + $0x10] sm:%s1624]
                %1638 = vst [vmem:[%s1632 + $0x20] sm:%s1624] %v1637
                %v1639 = vld [vmem:[%s1631 + $0x18] sm:%s1624]
                %1640 = vst [vmem:[%s1632 + $0x30] sm:%s1624] %v1639
              $region99: #{upsample_forward.1} parent=93 // loop_footer
                %s1630 = sadd.s32 1, %s1626
              $region100: #{upsample_forward.1} parent=93 // loop_footer_branch
                %1625 = sbr.rel target = $region96
              $region101: #{upsample_forward.1} parent=93 // loop_exit
                _
            $region94: #{upsample_forward.1} parent=85 // pred_fallthru
              _
          $region86: #{upsample_forward.1} parent=81 // pred_fallthru
            _
          %1661 = vnop
        $region82: #{upsample_forward.1} parent=65 // pred_fallthru
          _
      $region66: #{upsample_forward.1} parent=5 // pred_fallthru
        _
      %p1662 = scmp.le.s32.totalorder 2, %s11
      // Predicated region
      $region117: #{upsample_forward.1} parent=5 // pred_check
        %p1663 = pneg %p1662
      $region118: #{upsample_forward.1} parent=5 // pred_check_branch
        %1665 = sbr.rel (%p1663) target = $region120
      $region119: #{upsample_forward.1} parent=5 // pred_region
        %s1666 = ssub.s32 %s11, 2
        // Predicated region
        $region121: #{upsample_forward.1} parent=119 // pred_check
          %p1667 = pneg %p124
        $region122: #{upsample_forward.1} parent=119 // pred_check_branch
          %1669 = sbr.rel (%p1667) target = $region124
        $region123: #{upsample_forward.1} parent=119 // pred_region
          %s1670 = sand.u32 %s109, 1
          %s1671 = sand.u32 %s109, 1
          %s1672 = smul.addr %s1671, 32
          %s1673 = scalar_lea.vmem [#allocation7], %s1672
        $region124: #{upsample_forward.1} parent=119 // pred_fallthru
          _
      $region120: #{upsample_forward.1} parent=5 // pred_fallthru
        _
    $region6: #{upsample_forward.1} parent=1 // loop_footer
      %s15 = sadd.s32 1, %s11
    $region7: #{upsample_forward.1} parent=1 // loop_footer_branch
      %10 = sbr.rel target = $region3
    $region8: #{upsample_forward.1} parent=1 // loop_exit
      _
    %1674 = vsyncpa [#allocation4], 1
    %s1675 = scalar_lea.sflag [#allocation4], 1
    %1676 = vsyncpa %s1675, 1
    %1677 = vsyncpa [#allocation6], 1

</llo_original>
